<compile_context>
chip_gen: v6e
topology: v6e:2x2x1
jax: 0.10.0
libtpu: 0.0.40
codegen_flags: <defaults>
</compile_context>

<pallas_src>
import functools

import jax
import jax.numpy as jnp
import numpy as np
from jax import lax
from jax.experimental import pallas as pl
from jax.experimental.pallas import tpu as pltpu

_BN_EPS = 1e-5


# ----------------------------- Pallas kernel ------------------------------- #


def _basic_block_kernel(x_ref, w1_ref, b1_ref, mask_ref, w2_ref, b2_ref,
                        sc_ref, o_ref, p_ref, *, offs1, offs2, n_wide, wp2):
    """One batch element: conv1+bn1+relu -> (VMEM) -> conv2+bn2+add+relu."""
    f32 = jnp.float32
    B = n_wide

    # ---- conv1 (+ folded BN1 scale) as shifted matmuls over the flat input.
    x = x_ref[...].astype(f32)                      # (R_in, Cx); bf16 -> f32
    acc1 = jnp.zeros((B, w1_ref.shape[-1]), f32)
    for g, off in enumerate(offs1):
        acc1 += jnp.dot(x[off:off + B, :], w1_ref[g].astype(f32),
                        preferred_element_type=f32)
    z1 = jnp.maximum(acc1 + b1_ref[...], 0.0) * mask_ref[...]

    # ---- stage the conv1 output into the zero-padded conv2 input (VMEM only).
    p_ref[...] = jnp.zeros_like(p_ref)
    p_ref[wp2 + 1: wp2 + 1 + B, :] = z1

    # ---- conv2 (+ folded BN2 scale): 9 shifted matmuls over the padded
    #      intermediate, then bias + option-A shortcut + ReLU.
    acc2 = jnp.zeros((B, w2_ref.shape[-1]), f32)
    for t, off in enumerate(offs2):
        acc2 += jnp.dot(p_ref[off:off + B, :], w2_ref[t].astype(f32),
                        preferred_element_type=f32)
    y = acc2 + b2_ref[...] + sc_ref[...]
    o_ref[...] = jnp.maximum(y, 0.0).astype(o_ref.dtype)


# ------------------------------- JAX glue ---------------------------------- #


def _bn_fold(gamma, beta, mean, var):
    inv = gamma * lax.rsqrt(var + _BN_EPS)
    return inv.reshape(1, -1), (beta - mean * inv).reshape(1, -1)


@functools.partial(jax.jit, static_argnames=("stride", "compute_dtype"))
def basic_block_forward(x_nchw, params, *, stride, compute_dtype=jnp.bfloat16):
    if stride not in (1, 2):
        raise NotImplementedError("BasicBlock shortcut only supports stride 1/2")

    x = jnp.transpose(x_nchw, (0, 2, 3, 1)).astype(jnp.float32)   # NCHW -> NHWC
    N, H, W, Cin = x.shape
    mid = params["w1"].shape[-1]
    planes = params["w2"].shape[-1]

    Ho = (H - 1) // stride + 1
    Wo = (W - 1) // stride + 1
    Wp2 = Wo + 2                       # width of the zero-padded conv2 input
    B = Ho * Wp2                       # "wide" row count used by both stages
    Rp2 = (Ho + 2) * Wp2               # rows of the zero-padded conv2 input

    # Fold the BN scale into the conv weights; biases are added in-kernel.
    s1, b1 = _bn_fold(params["g1"], params["b1"], params["m1"], params["v1"])
    s2, b2 = _bn_fold(params["g2"], params["b2"], params["m2"], params["v2"])
    w1s = params["w1"].astype(jnp.float32) * s1              # (3,3,Cin,mid)
    w2s = (params["w2"].astype(jnp.float32) * s2).reshape(9, mid, planes)

    if stride == 1:
        # conv1 input: zero-padded image flattened to (rows, Cin); 9 taps.
        xp = jnp.pad(x, ((0, 0), (1, 1), (1, 1), (0, 0)))
        xflat = xp.reshape(N, (H + 2) * (W + 2), Cin)
        offs1 = tuple(kh * Wp2 + kw for kh in range(3) for kw in range(3))
        w1g = w1s.reshape(9, Cin, mid)
        cx = Cin
    else:
        # stride 2: space-to-depth so every tap becomes a stride-1 row shift;
        # the 9 taps merge into 4 grouped weight matrices over 4*Cin channels.
        hp, wp = 2 * (Ho + 1), 2 * Wp2
        xp = jnp.pad(x, ((0, 0), (1, hp - H - 1), (1, wp - W - 1), (0, 0)))
        phs = xp.reshape(N, Ho + 1, 2, Wp2, 2, Cin).transpose(0, 1, 3, 2, 4, 5)
        xflat = phs.reshape(N, (Ho + 1) * Wp2, 4 * Cin)
        offs1 = tuple(dh * Wp2 + dw for dh in range(2) for dw in range(2))
        w1g = jnp.zeros((4, 4 * Cin, mid), jnp.float32)
        for kh in range(3):
            for kw in range(3):
                g = (kh // 2) * 2 + (kw // 2)
                phc = (kh % 2) * 2 + (kw % 2)
                w1g = w1g.at[g, phc * Cin:(phc + 1) * Cin, :].set(w1s[kh, kw])
        cx = 4 * Cin

    # Two trailing all-zero rows keep every shifted window in bounds.
    xflat = jnp.pad(xflat, ((0, 0), (0, 2), (0, 0)))
    r_in = xflat.shape[1]

    offs2 = tuple(kh * Wp2 + kw for kh in range(3) for kw in range(3))

    # Mask of valid wide columns: the shifted-matmul trick produces 2 junk
    # columns per output row that must not leak into conv2's zero padding.
    mask = jnp.asarray((np.arange(B) % Wp2 < Wo).astype(np.float32))
    mask = mask.reshape(B, 1)

    # Option-A shortcut, laid out in the same wide geometry as the output.
    if stride != 1 or Cin != planes:
        sc = x[:, ::2, ::2, :] if stride != 1 else x
        lo = (planes - Cin) // 2
        hi = planes - Cin - lo
        sc = jnp.pad(sc, ((0, 0), (0, 0), (0, 0), (lo, hi)))
    else:
        sc = x
    sc_wide = jnp.pad(sc, ((0, 0), (0, 0), (0, Wp2 - Wo), (0, 0)))
    sc_wide = sc_wide.reshape(N, B, planes)

    kernel = functools.partial(_basic_block_kernel, offs1=offs1, offs2=offs2,
                               n_wide=B, wp2=Wp2)

    out_wide = pl.pallas_call(
        kernel,
        out_shape=jax.ShapeDtypeStruct((N, B, planes), jnp.float32),
        grid=(N,),
        in_specs=[
            pl.BlockSpec((None, r_in, cx), lambda n: (n, 0, 0)),
            pl.BlockSpec((len(offs1), cx, mid), lambda n: (0, 0, 0)),
            pl.BlockSpec((1, mid), lambda n: (0, 0)),
            pl.BlockSpec((B, 1), lambda n: (0, 0)),
            pl.BlockSpec((9, mid, planes), lambda n: (0, 0, 0)),
            pl.BlockSpec((1, planes), lambda n: (0, 0)),
            pl.BlockSpec((None, B, planes), lambda n: (n, 0, 0)),
        ],
        out_specs=pl.BlockSpec((None, B, planes), lambda n: (n, 0, 0)),
        scratch_shapes=[pltpu.VMEM((Rp2 + 2, mid), jnp.float32)],
        compiler_params=pltpu.CompilerParams(
            dimension_semantics=("parallel",)),
    )(xflat.astype(compute_dtype), w1g.astype(compute_dtype), b1, mask,
      w2s.astype(compute_dtype), b2, sc_wide)

    out = out_wide.reshape(N, Ho, Wp2, planes)[:, :, :Wo, :]
    return jnp.transpose(out, (0, 3, 1, 2))                   # NHWC -> NCHW


# --------------------------- pure-JAX reference ----------------------------- #


def _ref_forward(x_nchw, p, *, stride):
    x = jnp.transpose(x_nchw, (0, 2, 3, 1)).astype(jnp.float32)
    Cin = x.shape[-1]
    planes = p["w2"].shape[-1]

    def conv(a, w, s):
        return lax.conv_general_dilated(
            a, w, (s, s), ((1, 1), (1, 1)),
            dimension_numbers=("NHWC", "HWIO", "NHWC"),
            precision=lax.Precision.HIGHEST)

    def bn(a, g, b, m, v):
        return (a - m) / jnp.sqrt(v + _BN_EPS) * g + b

    out = jax.nn.relu(bn(conv(x, p["w1"], stride),
                         p["g1"], p["b1"], p["m1"], p["v1"]))
    out = bn(conv(out, p["w2"], 1), p["g2"], p["b2"], p["m2"], p["v2"])
    if stride != 1 or Cin != planes:
        sc = x[:, ::2, ::2, :] if stride != 1 else x
        lo = (planes - Cin) // 2
        hi = planes - Cin - lo
        sc = jnp.pad(sc, ((0, 0), (0, 0), (0, 0), (lo, hi)))
    else:
        sc = x
    out = jax.nn.relu(out + sc)
    return jnp.transpose(out, (0, 3, 1, 2))


# ---------------------------------- main ------------------------------------ #


if __name__ == "__main__":
    key = jax.random.PRNGKey(0)
    ks = jax.random.split(key, 4)

    def make_params(cin, mid, planes, keys):
        return {
            "w1": jax.random.normal(keys[0], (3, 3, cin, mid), jnp.float32)
                  * (1.0 / (3 * 3 * cin) ** 0.5),
            "g1": 1.0 + 0.1 * jax.random.normal(keys[1], (mid,), jnp.float32),
            "b1": 0.1 * jax.random.normal(keys[2], (mid,), jnp.float32),
            "m1": 0.1 * jax.random.normal(keys[3], (mid,), jnp.float32),
            "v1": 1.0 + 0.1 * jax.random.uniform(keys[4], (mid,), jnp.float32),
            "w2": jax.random.normal(keys[5], (3, 3, mid, planes), jnp.float32)
                  * (1.0 / (3 * 3 * mid) ** 0.5),
            "g2": 1.0 + 0.1 * jax.random.normal(keys[6], (planes,), jnp.float32),
            "b2": 0.1 * jax.random.normal(keys[7], (planes,), jnp.float32),
            "m2": 0.1 * jax.random.normal(keys[8], (planes,), jnp.float32),
            "v2": 1.0 + 0.1 * jax.random.uniform(keys[9], (planes,), jnp.float32),
        }

    # Block 1: downsampling block (stride 2, channels 4 -> (8, 8)).
    p1 = make_params(4, 8, 8, jax.random.split(ks[0], 10))
    x1 = jax.random.normal(ks[1], (2, 4, 16, 16), jnp.float32)

    out1_f32 = jax.block_until_ready(
        basic_block_forward(x1, p1, stride=2, compute_dtype=jnp.float32))
    ref1 = jax.block_until_ready(_ref_forward(x1, p1, stride=2))
    assert out1_f32.shape == (2, 8, 8, 8), out1_f32.shape
    np.testing.assert_allclose(np.asarray(out1_f32), np.asarray(ref1),
                               rtol=2e-4, atol=2e-4)

    # Same block with bf16 HBM operands feeding the kernel (f32 accumulation).
    out1_bf16 = jax.block_until_ready(
        basic_block_forward(x1, p1, stride=2, compute_dtype=jnp.bfloat16))
    np.testing.assert_allclose(np.asarray(out1_bf16), np.asarray(ref1),
                               rtol=5e-2, atol=5e-2)

    # Block 2: identity-shortcut block (stride 1, 8 -> (8, 8)), fed by block 1.
    p2 = make_params(8, 8, 8, jax.random.split(ks[2], 10))
    out2 = jax.block_until_ready(
        basic_block_forward(out1_f32, p2, stride=1, compute_dtype=jnp.float32))
    ref2 = jax.block_until_ready(_ref_forward(out1_f32, p2, stride=1))
    assert out2.shape == (2, 8, 8, 8), out2.shape
    np.testing.assert_allclose(np.asarray(out2), np.asarray(ref2),
                               rtol=2e-4, atol=2e-4)

    print("KERNEL_OK")
</pallas_src>

<mosaic_0001>
module attributes {stable_mosaic.version = 11 : i64} {
  func.func @_basic_block_kernel(%arg0: i32, %arg1: memref<1x92x16xf32, #tpu.memory_space<vmem>>, %arg2: memref<4x16x8xf32, #tpu.memory_space<vmem>>, %arg3: memref<1x8xf32, #tpu.memory_space<vmem>>, %arg4: memref<80x1xf32, #tpu.memory_space<vmem>>, %arg5: memref<9x8x8xf32, #tpu.memory_space<vmem>>, %arg6: memref<1x8xf32, #tpu.memory_space<vmem>>, %arg7: memref<1x80x8xf32, #tpu.memory_space<vmem>>, %arg8: memref<1x80x8xf32, #tpu.memory_space<vmem>>, %arg9: memref<102x8xf32, #tpu.memory_space<vmem>>) attributes {dimension_semantics = [#tpu.dimension_semantics<parallel>], iteration_bounds = array<i64: 2>, scalar_prefetch = 0 : i64, scratch_operands = 1 : i64, tpu.core_type = #tpu.core_type<tc>, window_params = [{transform_indices = @transform_0, window_bounds = array<i64: 1, 92, 16>}, {pipeline_mode = #tpu.pipeline_mode<synchronous>, transform_indices = @transform_1, window_bounds = array<i64: 4, 16, 8>}, {pipeline_mode = #tpu.pipeline_mode<synchronous>, transform_indices = @transform_2, window_bounds = array<i64: 1, 8>}, {pipeline_mode = #tpu.pipeline_mode<synchronous>, transform_indices = @transform_3, window_bounds = array<i64: 80, 1>}, {pipeline_mode = #tpu.pipeline_mode<synchronous>, transform_indices = @transform_4, window_bounds = array<i64: 9, 8, 8>}, {pipeline_mode = #tpu.pipeline_mode<synchronous>, transform_indices = @transform_5, window_bounds = array<i64: 1, 8>}, {transform_indices = @transform_6, window_bounds = array<i64: 1, 80, 8>}, {transform_indices = @transform_7, window_bounds = array<i64: 1, 80, 8>}]} {
    %c0 = arith.constant 0 : index
    %c0_0 = arith.constant 0 : index
    %c0_1 = arith.constant 0 : index
    %0 = vector.load %arg1[%c0, %c0_0, %c0_1] : memref<1x92x16xf32, #tpu.memory_space<vmem>>, vector<1x92x16xf32>
    %1 = vector.shape_cast %0 : vector<1x92x16xf32> to vector<92x16xf32>
    %cst = arith.constant 0.000000e+00 : f32
    %2 = vector.broadcast %cst : f32 to vector<80x8xf32>
    %3 = vector.extract_strided_slice %1 {offsets = [0, 0], sizes = [80, 16], strides = [1, 1]} : vector<92x16xf32> to vector<80x16xf32>
    %c0_2 = arith.constant 0 : index
    %c0_3 = arith.constant 0 : index
    %c0_4 = arith.constant 0 : index
    %4 = vector.load %arg2[%c0_2, %c0_3, %c0_4] : memref<4x16x8xf32, #tpu.memory_space<vmem>>, vector<1x16x8xf32>
    %5 = vector.shape_cast %4 : vector<1x16x8xf32> to vector<16x8xf32>
    %cst_5 = arith.constant dense<0.000000e+00> : vector<80x8xf32>
    %6 = tpu.matmul %3, %5, %cst_5 {dimension_numbers = #tpu.dot_dimension_numbers<[1], [0], [0], [1], [0, 0, 1, 1], [], []>} : vector<80x16xf32>, vector<16x8xf32>, vector<80x8xf32> -> vector<80x8xf32>
    %7 = arith.addf %2, %6 : vector<80x8xf32>
    %8 = vector.extract_strided_slice %1 {offsets = [1, 0], sizes = [80, 16], strides = [1, 1]} : vector<92x16xf32> to vector<80x16xf32>
    %c1 = arith.constant 1 : index
    %c0_6 = arith.constant 0 : index
    %c0_7 = arith.constant 0 : index
    %9 = vector.load %arg2[%c1, %c0_6, %c0_7] : memref<4x16x8xf32, #tpu.memory_space<vmem>>, vector<1x16x8xf32>
    %10 = vector.shape_cast %9 : vector<1x16x8xf32> to vector<16x8xf32>
    %cst_8 = arith.constant dense<0.000000e+00> : vector<80x8xf32>
    %11 = tpu.matmul %8, %10, %cst_8 {dimension_numbers = #tpu.dot_dimension_numbers<[1], [0], [0], [1], [0, 0, 1, 1], [], []>} : vector<80x16xf32>, vector<16x8xf32>, vector<80x8xf32> -> vector<80x8xf32>
    %12 = arith.addf %7, %11 : vector<80x8xf32>
    %13 = vector.extract_strided_slice %1 {offsets = [10, 0], sizes = [80, 16], strides = [1, 1]} : vector<92x16xf32> to vector<80x16xf32>
    %c2 = arith.constant 2 : index
    %c0_9 = arith.constant 0 : index
    %c0_10 = arith.constant 0 : index
    %14 = vector.load %arg2[%c2, %c0_9, %c0_10] : memref<4x16x8xf32, #tpu.memory_space<vmem>>, vector<1x16x8xf32>
    %15 = vector.shape_cast %14 : vector<1x16x8xf32> to vector<16x8xf32>
    %cst_11 = arith.constant dense<0.000000e+00> : vector<80x8xf32>
    %16 = tpu.matmul %13, %15, %cst_11 {dimension_numbers = #tpu.dot_dimension_numbers<[1], [0], [0], [1], [0, 0, 1, 1], [], []>} : vector<80x16xf32>, vector<16x8xf32>, vector<80x8xf32> -> vector<80x8xf32>
    %17 = arith.addf %12, %16 : vector<80x8xf32>
    %18 = vector.extract_strided_slice %1 {offsets = [11, 0], sizes = [80, 16], strides = [1, 1]} : vector<92x16xf32> to vector<80x16xf32>
    %c3 = arith.constant 3 : index
    %c0_12 = arith.constant 0 : index
    %c0_13 = arith.constant 0 : index
    %19 = vector.load %arg2[%c3, %c0_12, %c0_13] : memref<4x16x8xf32, #tpu.memory_space<vmem>>, vector<1x16x8xf32>
    %20 = vector.shape_cast %19 : vector<1x16x8xf32> to vector<16x8xf32>
    %cst_14 = arith.constant dense<0.000000e+00> : vector<80x8xf32>
    %21 = tpu.matmul %18, %20, %cst_14 {dimension_numbers = #tpu.dot_dimension_numbers<[1], [0], [0], [1], [0, 0, 1, 1], [], []>} : vector<80x16xf32>, vector<16x8xf32>, vector<80x8xf32> -> vector<80x8xf32>
    %22 = arith.addf %17, %21 : vector<80x8xf32>
    %c0_15 = arith.constant 0 : index
    %c0_16 = arith.constant 0 : index
    %23 = vector.load %arg3[%c0_15, %c0_16] : memref<1x8xf32, #tpu.memory_space<vmem>>, vector<1x8xf32>
    %24 = vector.broadcast %23 : vector<1x8xf32> to vector<80x8xf32>
    %25 = arith.addf %22, %24 : vector<80x8xf32>
    %cst_17 = arith.constant 0.000000e+00 : f32
    %26 = vector.broadcast %cst_17 : f32 to vector<80x8xf32>
    %27 = arith.maximumf %25, %26 : vector<80x8xf32>
    %c0_18 = arith.constant 0 : index
    %c0_19 = arith.constant 0 : index
    %28 = vector.load %arg4[%c0_18, %c0_19] : memref<80x1xf32, #tpu.memory_space<vmem>>, vector<80x1xf32>
    %29 = vector.broadcast %28 : vector<80x1xf32> to vector<80x8xf32>
    %30 = arith.mulf %27, %29 : vector<80x8xf32>
    %cst_20 = arith.constant 0.000000e+00 : f32
    %31 = vector.broadcast %cst_20 : f32 to vector<102x8xf32>
    %c0_21 = arith.constant 0 : index
    %c0_22 = arith.constant 0 : index
    %32 = vector.load %arg9[%c0_21, %c0_22] : memref<102x8xf32, #tpu.memory_space<vmem>>, vector<102x8xf32>
    tpu.vector_store %arg9[%c0_21, %c0_22], %31 {strides = array<i32>} : memref<102x8xf32, #tpu.memory_space<vmem>>, vector<102x8xf32>,
    %c11 = arith.constant 11 : index
    %c0_23 = arith.constant 0 : index
    %33 = vector.load %arg9[%c11, %c0_23] : memref<102x8xf32, #tpu.memory_space<vmem>>, vector<80x8xf32>
    tpu.vector_store %arg9[%c11, %c0_23], %30 {strides = array<i32>} : memref<102x8xf32, #tpu.memory_space<vmem>>, vector<80x8xf32>,
    %cst_24 = arith.constant 0.000000e+00 : f32
    %34 = vector.broadcast %cst_24 : f32 to vector<80x8xf32>
    %c0_25 = arith.constant 0 : index
    %c0_26 = arith.constant 0 : index
    %35 = vector.load %arg9[%c0_25, %c0_26] : memref<102x8xf32, #tpu.memory_space<vmem>>, vector<80x8xf32>
    %c0_27 = arith.constant 0 : index
    %c0_28 = arith.constant 0 : index
    %c0_29 = arith.constant 0 : index
    %36 = vector.load %arg5[%c0_27, %c0_28, %c0_29] : memref<9x8x8xf32, #tpu.memory_space<vmem>>, vector<1x8x8xf32>
    %37 = vector.shape_cast %36 : vector<1x8x8xf32> to vector<8x8xf32>
    %cst_30 = arith.constant dense<0.000000e+00> : vector<80x8xf32>
    %38 = tpu.matmul %35, %37, %cst_30 {dimension_numbers = #tpu.dot_dimension_numbers<[1], [0], [0], [1], [0, 0, 1, 1], [], []>} : vector<80x8xf32>, vector<8x8xf32>, vector<80x8xf32> -> vector<80x8xf32>
    %39 = arith.addf %34, %38 : vector<80x8xf32>
    %c1_31 = arith.constant 1 : index
    %c0_32 = arith.constant 0 : index
    %40 = vector.load %arg9[%c1_31, %c0_32] : memref<102x8xf32, #tpu.memory_space<vmem>>, vector<80x8xf32>
    %c1_33 = arith.constant 1 : index
    %c0_34 = arith.constant 0 : index
    %c0_35 = arith.constant 0 : index
    %41 = vector.load %arg5[%c1_33, %c0_34, %c0_35] : memref<9x8x8xf32, #tpu.memory_space<vmem>>, vector<1x8x8xf32>
    %42 = vector.shape_cast %41 : vector<1x8x8xf32> to vector<8x8xf32>
    %cst_36 = arith.constant dense<0.000000e+00> : vector<80x8xf32>
    %43 = tpu.matmul %40, %42, %cst_36 {dimension_numbers = #tpu.dot_dimension_numbers<[1], [0], [0], [1], [0, 0, 1, 1], [], []>} : vector<80x8xf32>, vector<8x8xf32>, vector<80x8xf32> -> vector<80x8xf32>
    %44 = arith.addf %39, %43 : vector<80x8xf32>
    %c2_37 = arith.constant 2 : index
    %c0_38 = arith.constant 0 : index
    %45 = vector.load %arg9[%c2_37, %c0_38] : memref<102x8xf32, #tpu.memory_space<vmem>>, vector<80x8xf32>
    %c2_39 = arith.constant 2 : index
    %c0_40 = arith.constant 0 : index
    %c0_41 = arith.constant 0 : index
    %46 = vector.load %arg5[%c2_39, %c0_40, %c0_41] : memref<9x8x8xf32, #tpu.memory_space<vmem>>, vector<1x8x8xf32>
    %47 = vector.shape_cast %46 : vector<1x8x8xf32> to vector<8x8xf32>
    %cst_42 = arith.constant dense<0.000000e+00> : vector<80x8xf32>
    %48 = tpu.matmul %45, %47, %cst_42 {dimension_numbers = #tpu.dot_dimension_numbers<[1], [0], [0], [1], [0, 0, 1, 1], [], []>} : vector<80x8xf32>, vector<8x8xf32>, vector<80x8xf32> -> vector<80x8xf32>
    %49 = arith.addf %44, %48 : vector<80x8xf32>
    %c10 = arith.constant 10 : index
    %c0_43 = arith.constant 0 : index
    %50 = vector.load %arg9[%c10, %c0_43] : memref<102x8xf32, #tpu.memory_space<vmem>>, vector<80x8xf32>
    %c3_44 = arith.constant 3 : index
    %c0_45 = arith.constant 0 : index
    %c0_46 = arith.constant 0 : index
    %51 = vector.load %arg5[%c3_44, %c0_45, %c0_46] : memref<9x8x8xf32, #tpu.memory_space<vmem>>, vector<1x8x8xf32>
    %52 = vector.shape_cast %51 : vector<1x8x8xf32> to vector<8x8xf32>
    %cst_47 = arith.constant dense<0.000000e+00> : vector<80x8xf32>
    %53 = tpu.matmul %50, %52, %cst_47 {dimension_numbers = #tpu.dot_dimension_numbers<[1], [0], [0], [1], [0, 0, 1, 1], [], []>} : vector<80x8xf32>, vector<8x8xf32>, vector<80x8xf32> -> vector<80x8xf32>
    %54 = arith.addf %49, %53 : vector<80x8xf32>
    %c11_48 = arith.constant 11 : index
    %c0_49 = arith.constant 0 : index
    %55 = vector.load %arg9[%c11_48, %c0_49] : memref<102x8xf32, #tpu.memory_space<vmem>>, vector<80x8xf32>
    %c4 = arith.constant 4 : index
    %c0_50 = arith.constant 0 : index
    %c0_51 = arith.constant 0 : index
    %56 = vector.load %arg5[%c4, %c0_50, %c0_51] : memref<9x8x8xf32, #tpu.memory_space<vmem>>, vector<1x8x8xf32>
    %57 = vector.shape_cast %56 : vector<1x8x8xf32> to vector<8x8xf32>
    %cst_52 = arith.constant dense<0.000000e+00> : vector<80x8xf32>
    %58 = tpu.matmul %55, %57, %cst_52 {dimension_numbers = #tpu.dot_dimension_numbers<[1], [0], [0], [1], [0, 0, 1, 1], [], []>} : vector<80x8xf32>, vector<8x8xf32>, vector<80x8xf32> -> vector<80x8xf32>
    %59 = arith.addf %54, %58 : vector<80x8xf32>
    %c12 = arith.constant 12 : index
    %c0_53 = arith.constant 0 : index
    %60 = vector.load %arg9[%c12, %c0_53] : memref<102x8xf32, #tpu.memory_space<vmem>>, vector<80x8xf32>
    %c5 = arith.constant 5 : index
    %c0_54 = arith.constant 0 : index
    %c0_55 = arith.constant 0 : index
    %61 = vector.load %arg5[%c5, %c0_54, %c0_55] : memref<9x8x8xf32, #tpu.memory_space<vmem>>, vector<1x8x8xf32>
    %62 = vector.shape_cast %61 : vector<1x8x8xf32> to vector<8x8xf32>
    %cst_56 = arith.constant dense<0.000000e+00> : vector<80x8xf32>
    %63 = tpu.matmul %60, %62, %cst_56 {dimension_numbers = #tpu.dot_dimension_numbers<[1], [0], [0], [1], [0, 0, 1, 1], [], []>} : vector<80x8xf32>, vector<8x8xf32>, vector<80x8xf32> -> vector<80x8xf32>
    %64 = arith.addf %59, %63 : vector<80x8xf32>
    %c20 = arith.constant 20 : index
    %c0_57 = arith.constant 0 : index
    %65 = vector.load %arg9[%c20, %c0_57] : memref<102x8xf32, #tpu.memory_space<vmem>>, vector<80x8xf32>
    %c6 = arith.constant 6 : index
    %c0_58 = arith.constant 0 : index
    %c0_59 = arith.constant 0 : index
    %66 = vector.load %arg5[%c6, %c0_58, %c0_59] : memref<9x8x8xf32, #tpu.memory_space<vmem>>, vector<1x8x8xf32>
    %67 = vector.shape_cast %66 : vector<1x8x8xf32> to vector<8x8xf32>
    %cst_60 = arith.constant dense<0.000000e+00> : vector<80x8xf32>
    %68 = tpu.matmul %65, %67, %cst_60 {dimension_numbers = #tpu.dot_dimension_numbers<[1], [0], [0], [1], [0, 0, 1, 1], [], []>} : vector<80x8xf32>, vector<8x8xf32>, vector<80x8xf32> -> vector<80x8xf32>
    %69 = arith.addf %64, %68 : vector<80x8xf32>
    %c21 = arith.constant 21 : index
    %c0_61 = arith.constant 0 : index
    %70 = vector.load %arg9[%c21, %c0_61] : memref<102x8xf32, #tpu.memory_space<vmem>>, vector<80x8xf32>
    %c7 = arith.constant 7 : index
    %c0_62 = arith.constant 0 : index
    %c0_63 = arith.constant 0 : index
    %71 = vector.load %arg5[%c7, %c0_62, %c0_63] : memref<9x8x8xf32, #tpu.memory_space<vmem>>, vector<1x8x8xf32>
    %72 = vector.shape_cast %71 : vector<1x8x8xf32> to vector<8x8xf32>
    %cst_64 = arith.constant dense<0.000000e+00> : vector<80x8xf32>
    %73 = tpu.matmul %70, %72, %cst_64 {dimension_numbers = #tpu.dot_dimension_numbers<[1], [0], [0], [1], [0, 0, 1, 1], [], []>} : vector<80x8xf32>, vector<8x8xf32>, vector<80x8xf32> -> vector<80x8xf32>
    %74 = arith.addf %69, %73 : vector<80x8xf32>
    %c22 = arith.constant 22 : index
    %c0_65 = arith.constant 0 : index
    %75 = vector.load %arg9[%c22, %c0_65] : memref<102x8xf32, #tpu.memory_space<vmem>>, vector<80x8xf32>
    %c8 = arith.constant 8 : index
    %c0_66 = arith.constant 0 : index
    %c0_67 = arith.constant 0 : index
    %76 = vector.load %arg5[%c8, %c0_66, %c0_67] : memref<9x8x8xf32, #tpu.memory_space<vmem>>, vector<1x8x8xf32>
    %77 = vector.shape_cast %76 : vector<1x8x8xf32> to vector<8x8xf32>
    %cst_68 = arith.constant dense<0.000000e+00> : vector<80x8xf32>
    %78 = tpu.matmul %75, %77, %cst_68 {dimension_numbers = #tpu.dot_dimension_numbers<[1], [0], [0], [1], [0, 0, 1, 1], [], []>} : vector<80x8xf32>, vector<8x8xf32>, vector<80x8xf32> -> vector<80x8xf32>
    %79 = arith.addf %74, %78 : vector<80x8xf32>
    %c0_69 = arith.constant 0 : index
    %c0_70 = arith.constant 0 : index
    %80 = vector.load %arg6[%c0_69, %c0_70] : memref<1x8xf32, #tpu.memory_space<vmem>>, vector<1x8xf32>
    %81 = vector.broadcast %80 : vector<1x8xf32> to vector<80x8xf32>
    %82 = arith.addf %79, %81 : vector<80x8xf32>
    %c0_71 = arith.constant 0 : index
    %c0_72 = arith.constant 0 : index
    %c0_73 = arith.constant 0 : index
    %83 = vector.load %arg7[%c0_71, %c0_72, %c0_73] : memref<1x80x8xf32, #tpu.memory_space<vmem>>, vector<1x80x8xf32>
    %84 = vector.shape_cast %83 : vector<1x80x8xf32> to vector<80x8xf32>
    %85 = arith.addf %82, %84 : vector<80x8xf32>
    %cst_74 = arith.constant 0.000000e+00 : f32
    %86 = vector.broadcast %cst_74 : f32 to vector<80x8xf32>
    %87 = arith.maximumf %85, %86 : vector<80x8xf32>
    %c0_75 = arith.constant 0 : index
    %c0_76 = arith.constant 0 : index
    %c0_77 = arith.constant 0 : index
    %88 = vector.load %arg8[%c0_75, %c0_76, %c0_77] : memref<1x80x8xf32, #tpu.memory_space<vmem>>, vector<1x80x8xf32>
    %89 = vector.shape_cast %88 : vector<1x80x8xf32> to vector<80x8xf32>
    %90 = vector.shape_cast %87 : vector<80x8xf32> to vector<1x80x8xf32>
    tpu.vector_store %arg8[%c0_75, %c0_76, %c0_77], %90 {strides = array<i32>} : memref<1x80x8xf32, #tpu.memory_space<vmem>>, vector<1x80x8xf32>,
    return
  }
  func.func @transform_0(%arg0: i32) -> (i32, i32, i32) {
    %c0_i32 = arith.constant 0 : i32
    %c0_i32_0 = arith.constant 0 : i32
    %c0_i32_1 = arith.constant 0 : i32
    return %arg0, %c0_i32, %c0_i32_0 : i32, i32, i32
  }
  func.func @transform_1(%arg0: i32) -> (i32, i32, i32) {
    %c0_i32 = arith.constant 0 : i32
    %c0_i32_0 = arith.constant 0 : i32
    %c0_i32_1 = arith.constant 0 : i32
    %c0_i32_2 = arith.constant 0 : i32
    return %c0_i32, %c0_i32_0, %c0_i32_1 : i32, i32, i32
  }
  func.func @transform_2(%arg0: i32) -> (i32, i32) {
    %c0_i32 = arith.constant 0 : i32
    %c0_i32_0 = arith.constant 0 : i32
    %c0_i32_1 = arith.constant 0 : i32
    return %c0_i32, %c0_i32_0 : i32, i32
  }
  func.func @transform_3(%arg0: i32) -> (i32, i32) {
    %c0_i32 = arith.constant 0 : i32
    %c0_i32_0 = arith.constant 0 : i32
    %c0_i32_1 = arith.constant 0 : i32
    return %c0_i32, %c0_i32_0 : i32, i32
  }
  func.func @transform_4(%arg0: i32) -> (i32, i32, i32) {
    %c0_i32 = arith.constant 0 : i32
    %c0_i32_0 = arith.constant 0 : i32
    %c0_i32_1 = arith.constant 0 : i32
    %c0_i32_2 = arith.constant 0 : i32
    return %c0_i32, %c0_i32_0, %c0_i32_1 : i32, i32, i32
  }
  func.func @transform_5(%arg0: i32) -> (i32, i32) {
    %c0_i32 = arith.constant 0 : i32
    %c0_i32_0 = arith.constant 0 : i32
    %c0_i32_1 = arith.constant 0 : i32
    return %c0_i32, %c0_i32_0 : i32, i32
  }
  func.func @transform_6(%arg0: i32) -> (i32, i32, i32) {
    %c0_i32 = arith.constant 0 : i32
    %c0_i32_0 = arith.constant 0 : i32
    %c0_i32_1 = arith.constant 0 : i32
    return %arg0, %c0_i32, %c0_i32_0 : i32, i32, i32
  }
  func.func @transform_7(%arg0: i32) -> (i32, i32, i32) {
    %c0_i32 = arith.constant 0 : i32
    %c0_i32_0 = arith.constant 0 : i32
    %c0_i32_1 = arith.constant 0 : i32
    return %arg0, %c0_i32, %c0_i32_0 : i32, i32, i32
  }
}

</mosaic_0001>

<llo_original>
// kernel: basic_block_forward.1
$region0: #{basic_block_forward.1}
  #allocation0 [shape = 'u32[]', space=smem, size = 0x4, offset = 0x4, fixed_abs, tag = 'smem constant byte address 0x4 - core index']
  #allocation1 [shape = 'u32[144,128]{1,0:T(1,128)}', space=vmem, size = 0x12000, scoped, tag = 'internal scratch']
  #allocation2 [shape = 'f32[102,8]{1,0:T(8,128)}', space=vmem, size = 0xd000, scoped, tag = 'scratch operand']
  %s0 = inlined_call_operand.vmem [shape: f32[2,92,16], index: 0, kind: input, shape index: {}]
  %s1 = inlined_call_operand.vmem [shape: f32[4,16,8], index: 1, kind: input, shape index: {}]
  %s2 = inlined_call_operand.vmem [shape: f32[1,8], index: 2, kind: input, shape index: {}]
  %s3 = inlined_call_operand.vmem [shape: f32[80,1], index: 3, kind: input, shape index: {}]
  %s4 = inlined_call_operand.vmem [shape: f32[9,8,8], index: 4, kind: input, shape index: {}]
  %s5 = inlined_call_operand.vmem [shape: f32[1,8], index: 5, kind: input, shape index: {}]
  %s6 = inlined_call_operand.vmem [shape: f32[2,80,8], index: 6, kind: input, shape index: {}]
  %s7 = inlined_call_operand.vmem [shape: f32[2,80,8], index: 7, kind: output, shape index: {}]
  %s8 = sld [smem:[#allocation0]]
  $region61: #{basic_block_forward.1} parent=0
    _
  %s10 = ssub.s32 1, %s8
  %s11 = scalar_select 0, %s10, %s8
  loop: start=0, step=1, limit=4
  $region2: #{basic_block_forward.1} parent=0 // loop_pre_header
    _
  $region3: #{basic_block_forward.1} parent=0 // loop_header
    %s13 = sphi 0, %s17
    %p14 = scmp.ge.s32.totalorder %s13, 4
    %s23 = sphi 0, %s25
    %s26 = sphi 0, %s23
    %s27 = sphi 0, %s26
    %s43 = sphi 0, %s27
    %s47 = sphi 0, %s47
    %s49 = sphi 0, %s47
    %s50 = sphi 0, %s49
    %s64 = sphi 0, %s50
    %s68 = sphi 0, %s68
    %s70 = sphi 0, %s68
    %s71 = sphi 0, %s70
    %s85 = sphi 0, %s71
    %s89 = sphi 0, %s89
    %s91 = sphi 0, %s89
    %s92 = sphi 0, %s91
    %s106 = sphi 0, %s92
    %s110 = sphi 0, %s110
    %s112 = sphi 0, %s110
    %s113 = sphi 0, %s112
    %s127 = sphi 0, %s113
    %s131 = sphi 0, %s131
    %s133 = sphi 0, %s131
    %s134 = sphi 0, %s133
    %s148 = sphi 0, %s134
    %s154 = sphi 0, %s156
    %s157 = sphi 0, %s154
    %s158 = sphi 0, %s157
    %s174 = sphi 0, %s158
    %s180 = sphi 0, %s182
    %s183 = sphi 0, %s180
    %s184 = sphi 0, %s183
    %s200 = sphi 0, %s184
  $region4: #{basic_block_forward.1} parent=0 // loop_header_branch
    %16 = sbr.rel (%p14) target = $region8
  $region5: #{basic_block_forward.1} parent=0 // loop_body
    %s18 = ssub.s32 %s13, 1
    %s19 = ssub.s32 %s13, 2
    %s20 = sadd.s32 %s13, 1
    %s21 = ssub.s32 %s13, %s20
    %p22 = scmp.eq.s32.totalorder %s21, 0
    %s24 = sadd.s32 %s23, 1
    %s25 = scalar_select %p22, %s23, %s24
    %p28 = pneg %p22
    %p29 = scmp.eq.s32.totalorder %s13, 1
    %p30 = por %p28, %p29
    %p31 = scmp.ne.s32.totalorder %s23, %s26
    %p32 = scmp.eq.s32.totalorder %s13, 0
    %p33 = por %p31, %p32
    %p34 = scmp.ne.s32.totalorder %s23, %s26
    %p35 = scmp.eq.s32.totalorder %s18, 1
    %p36 = por %p34, %p35
    %p37 = scmp.ne.s32.totalorder %s26, %s27
    %p38 = scmp.eq.s32.totalorder %s18, 0
    %p39 = por %p37, %p38
    %p40 = scmp.ne.s32.totalorder %s26, %s27
    %p41 = scmp.eq.s32.totalorder %s19, 1
    %p42 = por %p40, %p41
    %p44 = scmp.ne.s32.totalorder %s27, %s43
    %p45 = scmp.eq.s32.totalorder %s19, 0
    %p46 = por %p44, %p45
    %s48 = sadd.s32 %s47, 1
    %p51 = scmp.eq.s32.totalorder %s13, 1
    %p52 = scmp.ne.s32.totalorder %s47, %s49
    %p53 = scmp.eq.s32.totalorder %s13, 0
    %p54 = por %p52, %p53
    %p55 = scmp.ne.s32.totalorder %s47, %s49
    %p56 = scmp.eq.s32.totalorder %s18, 1
    %p57 = por %p55, %p56
    %p58 = scmp.ne.s32.totalorder %s49, %s50
    %p59 = scmp.eq.s32.totalorder %s18, 0
    %p60 = por %p58, %p59
    %p61 = scmp.ne.s32.totalorder %s49, %s50
    %p62 = scmp.eq.s32.totalorder %s19, 1
    %p63 = por %p61, %p62
    %p65 = scmp.ne.s32.totalorder %s50, %s64
    %p66 = scmp.eq.s32.totalorder %s19, 0
    %p67 = por %p65, %p66
    %s69 = sadd.s32 %s68, 1
    %p72 = scmp.eq.s32.totalorder %s13, 1
    %p73 = scmp.ne.s32.totalorder %s68, %s70
    %p74 = scmp.eq.s32.totalorder %s13, 0
    %p75 = por %p73, %p74
    %p76 = scmp.ne.s32.totalorder %s68, %s70
    %p77 = scmp.eq.s32.totalorder %s18, 1
    %p78 = por %p76, %p77
    %p79 = scmp.ne.s32.totalorder %s70, %s71
    %p80 = scmp.eq.s32.totalorder %s18, 0
    %p81 = por %p79, %p80
    %p82 = scmp.ne.s32.totalorder %s70, %s71
    %p83 = scmp.eq.s32.totalorder %s19, 1
    %p84 = por %p82, %p83
    %p86 = scmp.ne.s32.totalorder %s71, %s85
    %p87 = scmp.eq.s32.totalorder %s19, 0
    %p88 = por %p86, %p87
    %s90 = sadd.s32 %s89, 1
    %p93 = scmp.eq.s32.totalorder %s13, 1
    %p94 = scmp.ne.s32.totalorder %s89, %s91
    %p95 = scmp.eq.s32.totalorder %s13, 0
    %p96 = por %p94, %p95
    %p97 = scmp.ne.s32.totalorder %s89, %s91
    %p98 = scmp.eq.s32.totalorder %s18, 1
    %p99 = por %p97, %p98
    %p100 = scmp.ne.s32.totalorder %s91, %s92
    %p101 = scmp.eq.s32.totalorder %s18, 0
    %p102 = por %p100, %p101
    %p103 = scmp.ne.s32.totalorder %s91, %s92
    %p104 = scmp.eq.s32.totalorder %s19, 1
    %p105 = por %p103, %p104
    %p107 = scmp.ne.s32.totalorder %s92, %s106
    %p108 = scmp.eq.s32.totalorder %s19, 0
    %p109 = por %p107, %p108
    %s111 = sadd.s32 %s110, 1
    %p114 = scmp.eq.s32.totalorder %s13, 1
    %p115 = scmp.ne.s32.totalorder %s110, %s112
    %p116 = scmp.eq.s32.totalorder %s13, 0
    %p117 = por %p115, %p116
    %p118 = scmp.ne.s32.totalorder %s110, %s112
    %p119 = scmp.eq.s32.totalorder %s18, 1
    %p120 = por %p118, %p119
    %p121 = scmp.ne.s32.totalorder %s112, %s113
    %p122 = scmp.eq.s32.totalorder %s18, 0
    %p123 = por %p121, %p122
    %p124 = scmp.ne.s32.totalorder %s112, %s113
    %p125 = scmp.eq.s32.totalorder %s19, 1
    %p126 = por %p124, %p125
    %p128 = scmp.ne.s32.totalorder %s113, %s127
    %p129 = scmp.eq.s32.totalorder %s19, 0
    %p130 = por %p128, %p129
    %s132 = sadd.s32 %s131, 1
    %p135 = scmp.eq.s32.totalorder %s13, 1
    %p136 = scmp.ne.s32.totalorder %s131, %s133
    %p137 = scmp.eq.s32.totalorder %s13, 0
    %p138 = por %p136, %p137
    %p139 = scmp.ne.s32.totalorder %s131, %s133
    %p140 = scmp.eq.s32.totalorder %s18, 1
    %p141 = por %p139, %p140
    %p142 = scmp.ne.s32.totalorder %s133, %s134
    %p143 = scmp.eq.s32.totalorder %s18, 0
    %p144 = por %p142, %p143
    %p145 = scmp.ne.s32.totalorder %s133, %s134
    %p146 = scmp.eq.s32.totalorder %s19, 1
    %p147 = por %p145, %p146
    %p149 = scmp.ne.s32.totalorder %s134, %s148
    %p150 = scmp.eq.s32.totalorder %s19, 0
    %p151 = por %p149, %p150
    %s152 = ssub.s32 %s13, %s20
    %p153 = scmp.eq.s32.totalorder %s152, 0
    %s155 = sadd.s32 %s154, 1
    %s156 = scalar_select %p153, %s154, %s155
    %p159 = pneg %p153
    %p160 = scmp.eq.s32.totalorder %s13, 1
    %p161 = por %p159, %p160
    %p162 = scmp.ne.s32.totalorder %s154, %s157
    %p163 = scmp.eq.s32.totalorder %s13, 0
    %p164 = por %p162, %p163
    %p165 = scmp.ne.s32.totalorder %s154, %s157
    %p166 = scmp.eq.s32.totalorder %s18, 1
    %p167 = por %p165, %p166
    %p168 = scmp.ne.s32.totalorder %s157, %s158
    %p169 = scmp.eq.s32.totalorder %s18, 0
    %p170 = por %p168, %p169
    %p171 = scmp.ne.s32.totalorder %s157, %s158
    %p172 = scmp.eq.s32.totalorder %s19, 1
    %p173 = por %p171, %p172
    %p175 = scmp.ne.s32.totalorder %s158, %s174
    %p176 = scmp.eq.s32.totalorder %s19, 0
    %p177 = por %p175, %p176
    %s178 = ssub.s32 %s13, %s20
    %p179 = scmp.eq.s32.totalorder %s178, 0
    %s181 = sadd.s32 %s180, 1
    %s182 = scalar_select %p179, %s180, %s181
    %p185 = pneg %p179
    %p186 = scmp.eq.s32.totalorder %s13, 1
    %p187 = por %p185, %p186
    %p188 = scmp.ne.s32.totalorder %s180, %s183
    %p189 = scmp.eq.s32.totalorder %s13, 0
    %p190 = por %p188, %p189
    %p191 = scmp.ne.s32.totalorder %s180, %s183
    %p192 = scmp.eq.s32.totalorder %s18, 1
    %p193 = por %p191, %p192
    %p194 = scmp.ne.s32.totalorder %s183, %s184
    %p195 = scmp.eq.s32.totalorder %s18, 0
    %p196 = por %p194, %p195
    %p197 = scmp.ne.s32.totalorder %s183, %s184
    %p198 = scmp.eq.s32.totalorder %s19, 1
    %p199 = por %p197, %p198
    %p201 = scmp.ne.s32.totalorder %s184, %s200
    %p202 = scmp.eq.s32.totalorder %s19, 0
    %p203 = por %p201, %p202
    %p204 = scmp.le.s32.totalorder 1, %s13
    %p205 = scmp.lt.s32.totalorder %s13, 3
    %p206 = pnand %p204, %p205
    %p207 = pneg %p206
    // Predicated region
    $region9: #{basic_block_forward.1} parent=5 // pred_check
      _
    $region10: #{basic_block_forward.1} parent=5 // pred_check_branch
      %209 = sbr.rel (%p206) target = $region12
    $region11: #{basic_block_forward.1} parent=5 // pred_region
      %s210 = ssub.s32 %s13, 1
      // Predicated region
      $region13: #{basic_block_forward.1} parent=11 // pred_check
        %p211 = pneg %p60
      $region14: #{basic_block_forward.1} parent=11 // pred_check_branch
        %213 = sbr.rel (%p211) target = $region16
      $region15: #{basic_block_forward.1} parent=11 // pred_region
        _
      $region16: #{basic_block_forward.1} parent=11 // pred_fallthru
        _
      // Predicated region
      $region17: #{basic_block_forward.1} parent=11 // pred_check
        %p214 = pneg %p81
      $region18: #{basic_block_forward.1} parent=11 // pred_check_branch
        %216 = sbr.rel (%p214) target = $region20
      $region19: #{basic_block_forward.1} parent=11 // pred_region
        _
      $region20: #{basic_block_forward.1} parent=11 // pred_fallthru
        _
      // Predicated region
      $region21: #{basic_block_forward.1} parent=11 // pred_check
        %p217 = pneg %p102
      $region22: #{basic_block_forward.1} parent=11 // pred_check_branch
        %219 = sbr.rel (%p217) target = $region24
      $region23: #{basic_block_forward.1} parent=11 // pred_region
        _
      $region24: #{basic_block_forward.1} parent=11 // pred_fallthru
        _
      // Predicated region
      $region25: #{basic_block_forward.1} parent=11 // pred_check
        %p220 = pneg %p123
      $region26: #{basic_block_forward.1} parent=11 // pred_check_branch
        %222 = sbr.rel (%p220) target = $region28
      $region27: #{basic_block_forward.1} parent=11 // pred_region
        _
      $region28: #{basic_block_forward.1} parent=11 // pred_fallthru
        _
      // Predicated region
      $region29: #{basic_block_forward.1} parent=11 // pred_check
        %p223 = pneg %p144
      $region30: #{basic_block_forward.1} parent=11 // pred_check_branch
        %225 = sbr.rel (%p223) target = $region32
      $region31: #{basic_block_forward.1} parent=11 // pred_region
        _
      $region32: #{basic_block_forward.1} parent=11 // pred_fallthru
        _
    $region12: #{basic_block_forward.1} parent=5 // pred_fallthru
      _
    %p226 = scmp.lt.s32.totalorder %s13, 2
    // Predicated region
    $region33: #{basic_block_forward.1} parent=5 // pred_check
      %p227 = pneg %p226
    $region34: #{basic_block_forward.1} parent=5 // pred_check_branch
      %229 = sbr.rel (%p227) target = $region36
    $region35: #{basic_block_forward.1} parent=5 // pred_region
      // Predicated region
      $region37: #{basic_block_forward.1} parent=35 // pred_check
        %p230 = pneg %p33
      $region38: #{basic_block_forward.1} parent=35 // pred_check_branch
        %232 = sbr.rel (%p230) target = $region40
      $region39: #{basic_block_forward.1} parent=35 // pred_region
        %p233 = scmp.lt.s32.totalorder %s13, 1
        %s234 = scalar_select %p233, %s13, 1
        %s235 = smul.addr %s234, 12
        %s236 = smul.addr %s235, 8
        %s237 = scalar_lea.vmem %s0, %s236
      $region40: #{basic_block_forward.1} parent=35 // pred_fallthru
        _
      // Predicated region
      $region41: #{basic_block_forward.1} parent=35 // pred_check
        %p238 = pneg %p164
      $region42: #{basic_block_forward.1} parent=35 // pred_check_branch
        %240 = sbr.rel (%p238) target = $region44
      $region43: #{basic_block_forward.1} parent=35 // pred_region
        %p241 = scmp.lt.s32.totalorder %s13, 1
        %s242 = scalar_select %p241, %s13, 1
        %s243 = smul.addr %s242, 10
        %s244 = smul.addr %s243, 8
        %s245 = scalar_lea.vmem %s6, %s244
      $region44: #{basic_block_forward.1} parent=35 // pred_fallthru
        _
    $region36: #{basic_block_forward.1} parent=5 // pred_fallthru
      _
    %p246 = scmp.le.s32.totalorder 1, %s13
    %p247 = scmp.lt.s32.totalorder %s13, 3
    %p248 = pnand %p246, %p247
    %p249 = pneg %p248
    // Predicated region
    $region45: #{basic_block_forward.1} parent=5 // pred_check
      _
    $region46: #{basic_block_forward.1} parent=5 // pred_check_branch
      %251 = sbr.rel (%p248) target = $region48
    $region47: #{basic_block_forward.1} parent=5 // pred_region
      %s252 = ssub.s32 %s13, 1
      %p253 = scmp.lt.s32.totalorder %s18, 1
      %s254 = scalar_select %p253, %s18, 1
      %s255 = smul.addr %s254, 12
      %s256 = smul.addr %s255, 8
      %s257 = scalar_lea.vmem %s0, %s256
      %p258 = pneg %p39
      %p259 = pneg %p36
      %p260 = pneg %p60
      %p261 = pneg %p57
      %p262 = pneg %p81
      %p263 = pneg %p78
      %p264 = pneg %p102
      %p265 = pneg %p99
      %p266 = pneg %p123
      %p267 = pneg %p120
      %p268 = pneg %p144
      %p269 = pneg %p141
      %p270 = scmp.lt.s32.totalorder %s18, 1
      %s271 = scalar_select %p270, %s18, 1
      %s272 = smul.addr %s271, 10
      %s273 = smul.addr %s272, 8
      %s274 = scalar_lea.vmem %s6, %s273
      %p275 = pneg %p170
      %p276 = pneg %p167
      %p277 = pneg %p196
      %p278 = pneg %p193
      %p279 = scmp.lt.s32.totalorder %s18, 1
      %s280 = scalar_select %p279, %s18, 1
      %s281 = smul.addr %s280, 10
      %s282 = smul.addr %s281, 8
      %s283 = scalar_lea.vmem %s7, %s282
      %p284 = scmp.lt.s32.totalorder %s18, 1
      %s285 = scalar_select %p284, %s18, 1
      %s286 = smul.addr %s285, 12
      %s287 = smul.addr %s286, 8
      %s288 = scalar_lea.vmem %s0, %s287
      %p289 = scmp.lt.s32.totalorder %s18, 1
      %s290 = scalar_select %p289, %s18, 1
      %s291 = smul.addr %s290, 10
      %s292 = smul.addr %s291, 8
      %s293 = scalar_lea.vmem %s6, %s292
      %p294 = scmp.lt.s32.totalorder %s18, 1
      %s295 = scalar_select %p294, %s18, 1
      %s296 = smul.addr %s295, 10
      %s297 = smul.addr %s296, 8
      %s298 = scalar_lea.vmem %s7, %s297
      %v299 = vld [vmem:[%s288] sm:$0xff]
      %v300 = vld [vmem:[%s288 + $0x8] sm:$0xff]
      %v301 = vld [vmem:[%s288 + $0x10] sm:$0xff]
      %v302 = vld [vmem:[%s288 + $0x18] sm:$0xff]
      %v303 = vld [vmem:[%s288 + $0x20] sm:$0xff]
      %v304 = vld [vmem:[%s288 + $0x28] sm:$0xff]
      %v305 = vld [vmem:[%s288 + $0x30] sm:$0xff]
      %v306 = vld [vmem:[%s288 + $0x38] sm:$0xff]
      %v307 = vld [vmem:[%s288 + $0x40] sm:$0xff]
      %v308 = vld [vmem:[%s288 + $0x48] sm:$0xff]
      %v309 = vld [vmem:[%s288 + $0x50] sm:$0xff]
      %v310 = vld [vmem:[%s288 + $0x58] sm:$0xf]
      %v311 = vld [vmem:[%s1] sm:$0xff]
      %v312 = vld [vmem:[%s1 + $0x8] sm:$0xff]
      %s313 = scalar_lea.vmem %s1, 16
      %v314 = vld [vmem:[%s313] sm:$0xff]
      %v315 = vld [vmem:[%s313 + $0x8] sm:$0xff]
      %vm327 = vcmask 1046528
      %v328 = vrot.slane %v299, 1
      %v329 = vrot.slane %v300, 1
      %v330 = vsel %vm327, %v328, %v329
      %v331 = vrot.slane %v301, 1
      %v332 = vsel %vm327, %v329, %v331
      %v333 = vrot.slane %v302, 1
      %v334 = vsel %vm327, %v331, %v333
      %v335 = vrot.slane %v303, 1
      %v336 = vsel %vm327, %v333, %v335
      %v337 = vrot.slane %v304, 1
      %v338 = vsel %vm327, %v335, %v337
      %v339 = vrot.slane %v305, 1
      %v340 = vsel %vm327, %v337, %v339
      %v341 = vrot.slane %v306, 1
      %v342 = vsel %vm327, %v339, %v341
      %v343 = vrot.slane %v307, 1
      %v344 = vsel %vm327, %v341, %v343
      %v345 = vrot.slane %v308, 1
      %v346 = vsel %vm327, %v343, %v345
      %v347 = vrot.slane %v309, 1
      %v348 = vsel %vm327, %v345, %v347
      %vm349 = vcmask 130048
      %v350 = vsel %vm349, %v330, 0
      %v352 = vsel %vm349, %v332, 0
      %v354 = vsel %vm349, %v334, 0
      %v356 = vsel %vm349, %v336, 0
      %v358 = vsel %vm349, %v338, 0
      %v360 = vsel %vm349, %v340, 0
      %v362 = vsel %vm349, %v342, 0
      %v364 = vsel %vm349, %v344, 0
      %v366 = vsel %vm349, %v346, 0
      %v368 = vsel %vm349, %v348, 0
      %370 = vmatprep.subr.mxu0 0.0
      %371 = vmatpush1.msra.mxu0 0.0
      %372 = vmatprep.subr.mxu0 0.0
      %373 = vmatpush1.msra.mxu0 0.0
      %374 = vmatprep.subr.mxu0 0.0
      %375 = vmatpush1.msra.mxu0 0.0
      %376 = vmatprep.subr.mxu0 0.0
      %377 = vmatpush1.msra.mxu0 0.0
      %378 = vmatprep.subr.mxu0 0.0
      %379 = vmatpush1.msra.mxu0 0.0
      %380 = vmatprep.subr.mxu0 0.0
      %381 = vmatpush1.msra.mxu0 0.0
      %382 = vmatprep.subr.mxu0 0.0
      %383 = vmatpush1.msra.mxu0 0.0
      %384 = vmatprep.subr.mxu0 0.0
      %385 = vmatpush1.msra.mxu0 0.0
      %386 = vmatprep.subr.mxu0 0.0
      %387 = vmatpush1.msra.mxu0 0.0
      %388 = vmatprep.subr.mxu0 0.0
      %389 = vmatpush1.msra.mxu0 0.0
      %390 = vmatprep.subr.mxu0 0.0
      %391 = vmatpush1.msra.mxu0 0.0
      %392 = vmatprep.subr.mxu0 0.0
      %393 = vmatpush1.msra.mxu0 0.0
      %394 = vmatprep.subr.mxu0 0.0
      %395 = vmatpush1.msra.mxu0 0.0
      %396 = vmatprep.subr.mxu0 0.0
      %397 = vmatpush1.msra.mxu0 0.0
      %398 = vmatprep.subr.mxu0 0.0
      %399 = vmatpush1.msra.mxu0 %v315
      %400 = vmatprep.subr.mxu0 0.0
      %401 = vmatpush1.msra.mxu0 %v314
      %402 = vmatprep.subr.mxu0 0.0
      %403 = vmatpush2.msra.mxu0 0.0
      %404 = vmatprep.subr.mxu0 0.0
      %405 = vmatpush2.msra.mxu0 0.0
      %406 = vmatprep.subr.mxu0 0.0
      %407 = vmatpush2.msra.mxu0 0.0
      %408 = vmatprep.subr.mxu0 0.0
      %409 = vmatpush2.msra.mxu0 0.0
      %410 = vmatprep.subr.mxu0 0.0
      %411 = vmatpush2.msra.mxu0 0.0
      %412 = vmatprep.subr.mxu0 0.0
      %413 = vmatpush2.msra.mxu0 0.0
      %414 = vmatprep.subr.mxu0 0.0
      %415 = vmatpush2.msra.mxu0 0.0
      %416 = vmatprep.subr.mxu0 0.0
      %417 = vmatpush2.msra.mxu0 0.0
      %418 = vmatprep.subr.mxu0 0.0
      %419 = vmatpush2.msra.mxu0 0.0
      %420 = vmatprep.subr.mxu0 0.0
      %421 = vmatpush2.msra.mxu0 0.0
      %422 = vmatprep.subr.mxu0 0.0
      %423 = vmatpush2.msra.mxu0 0.0
      %424 = vmatprep.subr.mxu0 0.0
      %425 = vmatpush2.msra.mxu0 0.0
      %426 = vmatprep.subr.mxu0 0.0
      %427 = vmatpush2.msra.mxu0 0.0
      %428 = vmatprep.subr.mxu0 0.0
      %429 = vmatpush2.msra.mxu0 0.0
      %430 = vmatprep.subr.mxu0 0.0
      %431 = vmatpush2.msra.mxu0 0.0
      %432 = vmatprep.subr.mxu0 0.0
      %433 = vmatpush2.msra.mxu0 0.0
      %434 = vmatprep.mubr.f32.mxu0 0.0
      %435 = vmatmul.mubr.f32.gmra.mxu0 %v350
      %v436 = vpop.f32.mrf.mxu0
      %v437 = vadd.f32 0.0, %v436
      %v438 = vpop.f32.mrf.mxu0
      %439 = vmatprep.mubr.f32.mxu0 0.0
      %440 = vmatmul.mubr.f32.gmra.mxu0 %v352
      %v441 = vpop.f32.mrf.mxu0
      %v442 = vadd.f32 0.0, %v441
      %v443 = vpop.f32.mrf.mxu0
      %444 = vmatprep.mubr.f32.mxu0 0.0
      %445 = vmatmul.mubr.f32.gmra.mxu0 %v354
      %v446 = vpop.f32.mrf.mxu0
      %v447 = vadd.f32 0.0, %v446
      %v448 = vpop.f32.mrf.mxu0
      %449 = vmatprep.mubr.f32.mxu0 0.0
      %450 = vmatmul.mubr.f32.gmra.mxu0 %v356
      %v451 = vpop.f32.mrf.mxu0
      %v452 = vadd.f32 0.0, %v451
      %v453 = vpop.f32.mrf.mxu0
      %454 = vmatprep.mubr.f32.mxu0 0.0
      %455 = vmatmul.mubr.f32.gmra.mxu0 %v358
      %v456 = vpop.f32.mrf.mxu0
      %v457 = vadd.f32 0.0, %v456
      %v458 = vpop.f32.mrf.mxu0
      %459 = vmatprep.mubr.f32.mxu0 0.0
      %460 = vmatmul.mubr.f32.gmra.mxu0 %v360
      %v461 = vpop.f32.mrf.mxu0
      %v462 = vadd.f32 0.0, %v461
      %v463 = vpop.f32.mrf.mxu0
      %464 = vmatprep.mubr.f32.mxu0 0.0
      %465 = vmatmul.mubr.f32.gmra.mxu0 %v362
      %v466 = vpop.f32.mrf.mxu0
      %v467 = vadd.f32 0.0, %v466
      %v468 = vpop.f32.mrf.mxu0
      %469 = vmatprep.mubr.f32.mxu0 0.0
      %470 = vmatmul.mubr.f32.gmra.mxu0 %v364
      %v471 = vpop.f32.mrf.mxu0
      %v472 = vadd.f32 0.0, %v471
      %v473 = vpop.f32.mrf.mxu0
      %474 = vmatprep.mubr.f32.mxu0 0.0
      %475 = vmatmul.mubr.f32.gmra.mxu0 %v366
      %v476 = vpop.f32.mrf.mxu0
      %v477 = vadd.f32 0.0, %v476
      %v478 = vpop.f32.mrf.mxu0
      %479 = vmatprep.mubr.f32.mxu0 0.0
      %480 = vmatmul.mubr.f32.gmra.mxu0 %v368
      %v481 = vpop.f32.mrf.mxu0
      %v482 = vadd.f32 0.0, %v481
      %v483 = vpop.f32.mrf.mxu0
      %484 = vdwg.mxu0
      %v485 = vsel %vm349, %v299, 0
      %v487 = vsel %vm349, %v300, 0
      %v489 = vsel %vm349, %v301, 0
      %v491 = vsel %vm349, %v302, 0
      %v493 = vsel %vm349, %v303, 0
      %v495 = vsel %vm349, %v304, 0
      %v497 = vsel %vm349, %v305, 0
      %v499 = vsel %vm349, %v306, 0
      %v501 = vsel %vm349, %v307, 0
      %v503 = vsel %vm349, %v308, 0
      %505 = vmatprep.subr.mxu0 0.0
      %506 = vmatpush1.msra.mxu0 0.0
      %507 = vmatprep.subr.mxu0 0.0
      %508 = vmatpush1.msra.mxu0 0.0
      %509 = vmatprep.subr.mxu0 0.0
      %510 = vmatpush1.msra.mxu0 0.0
      %511 = vmatprep.subr.mxu0 0.0
      %512 = vmatpush1.msra.mxu0 0.0
      %513 = vmatprep.subr.mxu0 0.0
      %514 = vmatpush1.msra.mxu0 0.0
      %515 = vmatprep.subr.mxu0 0.0
      %516 = vmatpush1.msra.mxu0 0.0
      %517 = vmatprep.subr.mxu0 0.0
      %518 = vmatpush1.msra.mxu0 0.0
      %519 = vmatprep.subr.mxu0 0.0
      %520 = vmatpush1.msra.mxu0 0.0
      %521 = vmatprep.subr.mxu0 0.0
      %522 = vmatpush1.msra.mxu0 0.0
      %523 = vmatprep.subr.mxu0 0.0
      %524 = vmatpush1.msra.mxu0 0.0
      %525 = vmatprep.subr.mxu0 0.0
      %526 = vmatpush1.msra.mxu0 0.0
      %527 = vmatprep.subr.mxu0 0.0
      %528 = vmatpush1.msra.mxu0 0.0
      %529 = vmatprep.subr.mxu0 0.0
      %530 = vmatpush1.msra.mxu0 0.0
      %531 = vmatprep.subr.mxu0 0.0
      %532 = vmatpush1.msra.mxu0 0.0
      %533 = vmatprep.subr.mxu0 0.0
      %534 = vmatpush1.msra.mxu0 %v312
      %535 = vmatprep.subr.mxu0 0.0
      %536 = vmatpush1.msra.mxu0 %v311
      %537 = vmatprep.subr.mxu0 0.0
      %538 = vmatpush2.msra.mxu0 0.0
      %539 = vmatprep.subr.mxu0 0.0
      %540 = vmatpush2.msra.mxu0 0.0
      %541 = vmatprep.subr.mxu0 0.0
      %542 = vmatpush2.msra.mxu0 0.0
      %543 = vmatprep.subr.mxu0 0.0
      %544 = vmatpush2.msra.mxu0 0.0
      %545 = vmatprep.subr.mxu0 0.0
      %546 = vmatpush2.msra.mxu0 0.0
      %547 = vmatprep.subr.mxu0 0.0
      %548 = vmatpush2.msra.mxu0 0.0
      %549 = vmatprep.subr.mxu0 0.0
      %550 = vmatpush2.msra.mxu0 0.0
      %551 = vmatprep.subr.mxu0 0.0
      %552 = vmatpush2.msra.mxu0 0.0
      %553 = vmatprep.subr.mxu0 0.0
      %554 = vmatpush2.msra.mxu0 0.0
      %555 = vmatprep.subr.mxu0 0.0
      %556 = vmatpush2.msra.mxu0 0.0
      %557 = vmatprep.subr.mxu0 0.0
      %558 = vmatpush2.msra.mxu0 0.0
      %559 = vmatprep.subr.mxu0 0.0
      %560 = vmatpush2.msra.mxu0 0.0
      %561 = vmatprep.subr.mxu0 0.0
      %562 = vmatpush2.msra.mxu0 0.0
      %563 = vmatprep.subr.mxu0 0.0
      %564 = vmatpush2.msra.mxu0 0.0
      %565 = vmatprep.subr.mxu0 0.0
      %566 = vmatpush2.msra.mxu0 0.0
      %567 = vmatprep.subr.mxu0 0.0
      %568 = vmatpush2.msra.mxu0 0.0
      %569 = vmatprep.mubr.f32.mxu0 0.0
      %570 = vmatmul.mubr.f32.gmra.mxu0 %v485
      %v571 = vpop.f32.mrf.mxu0
      %v572 = vadd.f32 %v437, %v571
      %v573 = vpop.f32.mrf.mxu0
      %574 = vmatprep.mubr.f32.mxu0 0.0
      %575 = vmatmul.mubr.f32.gmra.mxu0 %v487
      %v576 = vpop.f32.mrf.mxu0
      %v577 = vadd.f32 %v442, %v576
      %v578 = vpop.f32.mrf.mxu0
      %579 = vmatprep.mubr.f32.mxu0 0.0
      %580 = vmatmul.mubr.f32.gmra.mxu0 %v489
      %v581 = vpop.f32.mrf.mxu0
      %v582 = vadd.f32 %v447, %v581
      %v583 = vpop.f32.mrf.mxu0
      %584 = vmatprep.mubr.f32.mxu0 0.0
      %585 = vmatmul.mubr.f32.gmra.mxu0 %v491
      %v586 = vpop.f32.mrf.mxu0
      %v587 = vadd.f32 %v452, %v586
      %v588 = vpop.f32.mrf.mxu0
      %589 = vmatprep.mubr.f32.mxu0 0.0
      %590 = vmatmul.mubr.f32.gmra.mxu0 %v493
      %v591 = vpop.f32.mrf.mxu0
      %v592 = vadd.f32 %v457, %v591
      %v593 = vpop.f32.mrf.mxu0
      %594 = vmatprep.mubr.f32.mxu0 0.0
      %595 = vmatmul.mubr.f32.gmra.mxu0 %v495
      %v596 = vpop.f32.mrf.mxu0
      %v597 = vadd.f32 %v462, %v596
      %v598 = vpop.f32.mrf.mxu0
      %599 = vmatprep.mubr.f32.mxu0 0.0
      %600 = vmatmul.mubr.f32.gmra.mxu0 %v497
      %v601 = vpop.f32.mrf.mxu0
      %v602 = vadd.f32 %v467, %v601
      %v603 = vpop.f32.mrf.mxu0
      %604 = vmatprep.mubr.f32.mxu0 0.0
      %605 = vmatmul.mubr.f32.gmra.mxu0 %v499
      %v606 = vpop.f32.mrf.mxu0
      %v607 = vadd.f32 %v472, %v606
      %v608 = vpop.f32.mrf.mxu0
      %609 = vmatprep.mubr.f32.mxu0 0.0
      %610 = vmatmul.mubr.f32.gmra.mxu0 %v501
      %v611 = vpop.f32.mrf.mxu0
      %v612 = vadd.f32 %v477, %v611
      %v613 = vpop.f32.mrf.mxu0
      %614 = vmatprep.mubr.f32.mxu0 0.0
      %615 = vmatmul.mubr.f32.gmra.mxu0 %v503
      %v616 = vpop.f32.mrf.mxu0
      %v617 = vadd.f32 %v482, %v616
      %v618 = vpop.f32.mrf.mxu0
      %619 = vdwg.mxu0
      %s620 = scalar_lea.vmem %s1, 32
      %v621 = vld [vmem:[%s620] sm:$0xff]
      %v622 = vld [vmem:[%s620 + $0x8] sm:$0xff]
      %vm624 = vcmask 1045504
      %v625 = vrot.slane %v300, 2
      %v626 = vrot.slane %v301, 2
      %v627 = vsel %vm624, %v625, %v626
      %v628 = vrot.slane %v302, 2
      %v629 = vsel %vm624, %v626, %v628
      %v630 = vrot.slane %v303, 2
      %v631 = vsel %vm624, %v628, %v630
      %v632 = vrot.slane %v304, 2
      %v633 = vsel %vm624, %v630, %v632
      %v634 = vrot.slane %v305, 2
      %v635 = vsel %vm624, %v632, %v634
      %v636 = vrot.slane %v306, 2
      %v637 = vsel %vm624, %v634, %v636
      %v638 = vrot.slane %v307, 2
      %v639 = vsel %vm624, %v636, %v638
      %v640 = vrot.slane %v308, 2
      %v641 = vsel %vm624, %v638, %v640
      %v642 = vrot.slane %v309, 2
      %v643 = vsel %vm624, %v640, %v642
      %v644 = vrot.slane %v310, 2
      %v645 = vsel %vm624, %v642, %v644
      %v646 = vsel %vm349, %v627, 0
      %v648 = vsel %vm349, %v629, 0
      %v650 = vsel %vm349, %v631, 0
      %v652 = vsel %vm349, %v633, 0
      %v654 = vsel %vm349, %v635, 0
      %v656 = vsel %vm349, %v637, 0
      %v658 = vsel %vm349, %v639, 0
      %v660 = vsel %vm349, %v641, 0
      %v662 = vsel %vm349, %v643, 0
      %v664 = vsel %vm349, %v645, 0
      %666 = vmatprep.subr.mxu0 0.0
      %667 = vmatpush1.msra.mxu0 0.0
      %668 = vmatprep.subr.mxu0 0.0
      %669 = vmatpush1.msra.mxu0 0.0
      %670 = vmatprep.subr.mxu0 0.0
      %671 = vmatpush1.msra.mxu0 0.0
      %672 = vmatprep.subr.mxu0 0.0
      %673 = vmatpush1.msra.mxu0 0.0
      %674 = vmatprep.subr.mxu0 0.0
      %675 = vmatpush1.msra.mxu0 0.0
      %676 = vmatprep.subr.mxu0 0.0
      %677 = vmatpush1.msra.mxu0 0.0
      %678 = vmatprep.subr.mxu0 0.0
      %679 = vmatpush1.msra.mxu0 0.0
      %680 = vmatprep.subr.mxu0 0.0
      %681 = vmatpush1.msra.mxu0 0.0
      %682 = vmatprep.subr.mxu0 0.0
      %683 = vmatpush1.msra.mxu0 0.0
      %684 = vmatprep.subr.mxu0 0.0
      %685 = vmatpush1.msra.mxu0 0.0
      %686 = vmatprep.subr.mxu0 0.0
      %687 = vmatpush1.msra.mxu0 0.0
      %688 = vmatprep.subr.mxu0 0.0
      %689 = vmatpush1.msra.mxu0 0.0
      %690 = vmatprep.subr.mxu0 0.0
      %691 = vmatpush1.msra.mxu0 0.0
      %692 = vmatprep.subr.mxu0 0.0
      %693 = vmatpush1.msra.mxu0 0.0
      %694 = vmatprep.subr.mxu0 0.0
      %695 = vmatpush1.msra.mxu0 %v622
      %696 = vmatprep.subr.mxu0 0.0
      %697 = vmatpush1.msra.mxu0 %v621
      %698 = vmatprep.subr.mxu0 0.0
      %699 = vmatpush2.msra.mxu0 0.0
      %700 = vmatprep.subr.mxu0 0.0
      %701 = vmatpush2.msra.mxu0 0.0
      %702 = vmatprep.subr.mxu0 0.0
      %703 = vmatpush2.msra.mxu0 0.0
      %704 = vmatprep.subr.mxu0 0.0
      %705 = vmatpush2.msra.mxu0 0.0
      %706 = vmatprep.subr.mxu0 0.0
      %707 = vmatpush2.msra.mxu0 0.0
      %708 = vmatprep.subr.mxu0 0.0
      %709 = vmatpush2.msra.mxu0 0.0
      %710 = vmatprep.subr.mxu0 0.0
      %711 = vmatpush2.msra.mxu0 0.0
      %712 = vmatprep.subr.mxu0 0.0
      %713 = vmatpush2.msra.mxu0 0.0
      %714 = vmatprep.subr.mxu0 0.0
      %715 = vmatpush2.msra.mxu0 0.0
      %716 = vmatprep.subr.mxu0 0.0
      %717 = vmatpush2.msra.mxu0 0.0
      %718 = vmatprep.subr.mxu0 0.0
      %719 = vmatpush2.msra.mxu0 0.0
      %720 = vmatprep.subr.mxu0 0.0
      %721 = vmatpush2.msra.mxu0 0.0
      %722 = vmatprep.subr.mxu0 0.0
      %723 = vmatpush2.msra.mxu0 0.0
      %724 = vmatprep.subr.mxu0 0.0
      %725 = vmatpush2.msra.mxu0 0.0
      %726 = vmatprep.subr.mxu0 0.0
      %727 = vmatpush2.msra.mxu0 0.0
      %728 = vmatprep.subr.mxu0 0.0
      %729 = vmatpush2.msra.mxu0 0.0
      %730 = vmatprep.mubr.f32.mxu0 0.0
      %731 = vmatmul.mubr.f32.gmra.mxu0 %v646
      %v732 = vpop.f32.mrf.mxu0
      %v733 = vadd.f32 0.0, %v732
      %v734 = vpop.f32.mrf.mxu0
      %735 = vmatprep.mubr.f32.mxu0 0.0
      %736 = vmatmul.mubr.f32.gmra.mxu0 %v648
      %v737 = vpop.f32.mrf.mxu0
      %v738 = vadd.f32 0.0, %v737
      %v739 = vpop.f32.mrf.mxu0
      %740 = vmatprep.mubr.f32.mxu0 0.0
      %741 = vmatmul.mubr.f32.gmra.mxu0 %v650
      %v742 = vpop.f32.mrf.mxu0
      %v743 = vadd.f32 0.0, %v742
      %v744 = vpop.f32.mrf.mxu0
      %745 = vmatprep.mubr.f32.mxu0 0.0
      %746 = vmatmul.mubr.f32.gmra.mxu0 %v652
      %v747 = vpop.f32.mrf.mxu0
      %v748 = vadd.f32 0.0, %v747
      %v749 = vpop.f32.mrf.mxu0
      %750 = vmatprep.mubr.f32.mxu0 0.0
      %751 = vmatmul.mubr.f32.gmra.mxu0 %v654
      %v752 = vpop.f32.mrf.mxu0
      %v753 = vadd.f32 0.0, %v752
      %v754 = vpop.f32.mrf.mxu0
      %755 = vmatprep.mubr.f32.mxu0 0.0
      %756 = vmatmul.mubr.f32.gmra.mxu0 %v656
      %v757 = vpop.f32.mrf.mxu0
      %v758 = vadd.f32 0.0, %v757
      %v759 = vpop.f32.mrf.mxu0
      %760 = vmatprep.mubr.f32.mxu0 0.0
      %761 = vmatmul.mubr.f32.gmra.mxu0 %v658
      %v762 = vpop.f32.mrf.mxu0
      %v763 = vadd.f32 0.0, %v762
      %v764 = vpop.f32.mrf.mxu0
      %765 = vmatprep.mubr.f32.mxu0 0.0
      %766 = vmatmul.mubr.f32.gmra.mxu0 %v660
      %v767 = vpop.f32.mrf.mxu0
      %v768 = vadd.f32 0.0, %v767
      %v769 = vpop.f32.mrf.mxu0
      %770 = vmatprep.mubr.f32.mxu0 0.0
      %771 = vmatmul.mubr.f32.gmra.mxu0 %v662
      %v772 = vpop.f32.mrf.mxu0
      %v773 = vadd.f32 0.0, %v772
      %v774 = vpop.f32.mrf.mxu0
      %775 = vmatprep.mubr.f32.mxu0 0.0
      %776 = vmatmul.mubr.f32.gmra.mxu0 %v664
      %v777 = vpop.f32.mrf.mxu0
      %v778 = vadd.f32 0.0, %v777
      %v779 = vpop.f32.mrf.mxu0
      %780 = vdwg.mxu0
      %v781 = vadd.f32 %v572, %v733
      %v782 = vadd.f32 %v577, %v738
      %v783 = vadd.f32 %v582, %v743
      %v784 = vadd.f32 %v587, %v748
      %v785 = vadd.f32 %v592, %v753
      %v786 = vadd.f32 %v597, %v758
      %v787 = vadd.f32 %v602, %v763
      %v788 = vadd.f32 %v607, %v768
      %v789 = vadd.f32 %v612, %v773
      %v790 = vadd.f32 %v617, %v778
      %s791 = scalar_lea.vmem %s1, 48
      %v792 = vld [vmem:[%s791] sm:$0xff]
      %v793 = vld [vmem:[%s791 + $0x8] sm:$0xff]
      %vm794 = vcmask 1044480
      %v795 = vrot.slane %v300, 3
      %v796 = vrot.slane %v301, 3
      %v797 = vsel %vm794, %v795, %v796
      %v798 = vrot.slane %v302, 3
      %v799 = vsel %vm794, %v796, %v798
      %v800 = vrot.slane %v303, 3
      %v801 = vsel %vm794, %v798, %v800
      %v802 = vrot.slane %v304, 3
      %v803 = vsel %vm794, %v800, %v802
      %v804 = vrot.slane %v305, 3
      %v805 = vsel %vm794, %v802, %v804
      %v806 = vrot.slane %v306, 3
      %v807 = vsel %vm794, %v804, %v806
      %v808 = vrot.slane %v307, 3
      %v809 = vsel %vm794, %v806, %v808
      %v810 = vrot.slane %v308, 3
      %v811 = vsel %vm794, %v808, %v810
      %v812 = vrot.slane %v309, 3
      %v813 = vsel %vm794, %v810, %v812
      %v814 = vrot.slane %v310, 3
      %v815 = vsel %vm794, %v812, %v814
      %v816 = vsel %vm349, %v797, 0
      %v818 = vsel %vm349, %v799, 0
      %v820 = vsel %vm349, %v801, 0
      %v822 = vsel %vm349, %v803, 0
      %v824 = vsel %vm349, %v805, 0
      %v826 = vsel %vm349, %v807, 0
      %v828 = vsel %vm349, %v809, 0
      %v830 = vsel %vm349, %v811, 0
      %v832 = vsel %vm349, %v813, 0
      %v834 = vsel %vm349, %v815, 0
      %836 = vmatprep.subr.mxu0 0.0
      %837 = vmatpush1.msra.mxu0 0.0
      %838 = vmatprep.subr.mxu0 0.0
      %839 = vmatpush1.msra.mxu0 0.0
      %840 = vmatprep.subr.mxu0 0.0
      %841 = vmatpush1.msra.mxu0 0.0
      %842 = vmatprep.subr.mxu0 0.0
      %843 = vmatpush1.msra.mxu0 0.0
      %844 = vmatprep.subr.mxu0 0.0
      %845 = vmatpush1.msra.mxu0 0.0
      %846 = vmatprep.subr.mxu0 0.0
      %847 = vmatpush1.msra.mxu0 0.0
      %848 = vmatprep.subr.mxu0 0.0
      %849 = vmatpush1.msra.mxu0 0.0
      %850 = vmatprep.subr.mxu0 0.0
      %851 = vmatpush1.msra.mxu0 0.0
      %852 = vmatprep.subr.mxu0 0.0
      %853 = vmatpush1.msra.mxu0 0.0
      %854 = vmatprep.subr.mxu0 0.0
      %855 = vmatpush1.msra.mxu0 0.0
      %856 = vmatprep.subr.mxu0 0.0
      %857 = vmatpush1.msra.mxu0 0.0
      %858 = vmatprep.subr.mxu0 0.0
      %859 = vmatpush1.msra.mxu0 0.0
      %860 = vmatprep.subr.mxu0 0.0
      %861 = vmatpush1.msra.mxu0 0.0
      %862 = vmatprep.subr.mxu0 0.0
      %863 = vmatpush1.msra.mxu0 0.0
      %864 = vmatprep.subr.mxu0 0.0
      %865 = vmatpush1.msra.mxu0 %v793
      %866 = vmatprep.subr.mxu0 0.0
      %867 = vmatpush1.msra.mxu0 %v792
      %868 = vmatprep.subr.mxu0 0.0
      %869 = vmatpush2.msra.mxu0 0.0
      %870 = vmatprep.subr.mxu0 0.0
      %871 = vmatpush2.msra.mxu0 0.0
      %872 = vmatprep.subr.mxu0 0.0
      %873 = vmatpush2.msra.mxu0 0.0
      %874 = vmatprep.subr.mxu0 0.0
      %875 = vmatpush2.msra.mxu0 0.0
      %876 = vmatprep.subr.mxu0 0.0
      %877 = vmatpush2.msra.mxu0 0.0
      %878 = vmatprep.subr.mxu0 0.0
      %879 = vmatpush2.msra.mxu0 0.0
      %880 = vmatprep.subr.mxu0 0.0
      %881 = vmatpush2.msra.mxu0 0.0
      %882 = vmatprep.subr.mxu0 0.0
      %883 = vmatpush2.msra.mxu0 0.0
      %884 = vmatprep.subr.mxu0 0.0
      %885 = vmatpush2.msra.mxu0 0.0
      %886 = vmatprep.subr.mxu0 0.0
      %887 = vmatpush2.msra.mxu0 0.0
      %888 = vmatprep.subr.mxu0 0.0
      %889 = vmatpush2.msra.mxu0 0.0
      %890 = vmatprep.subr.mxu0 0.0
      %891 = vmatpush2.msra.mxu0 0.0
      %892 = vmatprep.subr.mxu0 0.0
      %893 = vmatpush2.msra.mxu0 0.0
      %894 = vmatprep.subr.mxu0 0.0
      %895 = vmatpush2.msra.mxu0 0.0
      %896 = vmatprep.subr.mxu0 0.0
      %897 = vmatpush2.msra.mxu0 0.0
      %898 = vmatprep.subr.mxu0 0.0
      %899 = vmatpush2.msra.mxu0 0.0
      %900 = vmatprep.mubr.f32.mxu0 0.0
      %901 = vmatmul.mubr.f32.gmra.mxu0 %v816
      %v902 = vpop.f32.mrf.mxu0
      %v903 = vadd.f32 0.0, %v902
      %v904 = vpop.f32.mrf.mxu0
      %905 = vmatprep.mubr.f32.mxu0 0.0
      %906 = vmatmul.mubr.f32.gmra.mxu0 %v818
      %v907 = vpop.f32.mrf.mxu0
      %v908 = vadd.f32 0.0, %v907
      %v909 = vpop.f32.mrf.mxu0
      %910 = vmatprep.mubr.f32.mxu0 0.0
      %911 = vmatmul.mubr.f32.gmra.mxu0 %v820
      %v912 = vpop.f32.mrf.mxu0
      %v913 = vadd.f32 0.0, %v912
      %v914 = vpop.f32.mrf.mxu0
      %915 = vmatprep.mubr.f32.mxu0 0.0
      %916 = vmatmul.mubr.f32.gmra.mxu0 %v822
      %v917 = vpop.f32.mrf.mxu0
      %v918 = vadd.f32 0.0, %v917
      %v919 = vpop.f32.mrf.mxu0
      %920 = vmatprep.mubr.f32.mxu0 0.0
      %921 = vmatmul.mubr.f32.gmra.mxu0 %v824
      %v922 = vpop.f32.mrf.mxu0
      %v923 = vadd.f32 0.0, %v922
      %v924 = vpop.f32.mrf.mxu0
      %925 = vmatprep.mubr.f32.mxu0 0.0
      %926 = vmatmul.mubr.f32.gmra.mxu0 %v826
      %v927 = vpop.f32.mrf.mxu0
      %v928 = vadd.f32 0.0, %v927
      %v929 = vpop.f32.mrf.mxu0
      %930 = vmatprep.mubr.f32.mxu0 0.0
      %931 = vmatmul.mubr.f32.gmra.mxu0 %v828
      %v932 = vpop.f32.mrf.mxu0
      %v933 = vadd.f32 0.0, %v932
      %v934 = vpop.f32.mrf.mxu0
      %935 = vmatprep.mubr.f32.mxu0 0.0
      %936 = vmatmul.mubr.f32.gmra.mxu0 %v830
      %v937 = vpop.f32.mrf.mxu0
      %v938 = vadd.f32 0.0, %v937
      %v939 = vpop.f32.mrf.mxu0
      %940 = vmatprep.mubr.f32.mxu0 0.0
      %941 = vmatmul.mubr.f32.gmra.mxu0 %v832
      %v942 = vpop.f32.mrf.mxu0
      %v943 = vadd.f32 0.0, %v942
      %v944 = vpop.f32.mrf.mxu0
      %945 = vmatprep.mubr.f32.mxu0 0.0
      %946 = vmatmul.mubr.f32.gmra.mxu0 %v834
      %v947 = vpop.f32.mrf.mxu0
      %v948 = vadd.f32 0.0, %v947
      %v949 = vpop.f32.mrf.mxu0
      %950 = vdwg.mxu0
      %v951 = vadd.f32 %v781, %v903
      %v952 = vadd.f32 %v782, %v908
      %v953 = vadd.f32 %v783, %v913
      %v954 = vadd.f32 %v784, %v918
      %v955 = vadd.f32 %v785, %v923
      %v956 = vadd.f32 %v786, %v928
      %v957 = vadd.f32 %v787, %v933
      %v958 = vadd.f32 %v788, %v938
      %v959 = vadd.f32 %v789, %v943
      %v960 = vadd.f32 %v790, %v948
      %v961 = vld [vmem:[%s2] sm:$0x1]
      %v963 = vlaneseq
      %v964 = vshrl.u32 %v963, 7
      %v965 = vsub.s32 0, %v964
      %v966 = vrot.slane %v961, %v965
      %v968 = vadd.f32 %v951, %v966
      %v969 = vadd.f32 %v952, %v966
      %v970 = vadd.f32 %v953, %v966
      %v971 = vadd.f32 %v954, %v966
      %v972 = vadd.f32 %v955, %v966
      %v973 = vadd.f32 %v956, %v966
      %v974 = vadd.f32 %v957, %v966
      %v975 = vadd.f32 %v958, %v966
      %v976 = vadd.f32 %v959, %v966
      %v977 = vadd.f32 %v960, %v966
      %v978 = vmax.f32 %v968, 0.0
      %v979 = vmax.f32 %v969, 0.0
      %v980 = vmax.f32 %v970, 0.0
      %v981 = vmax.f32 %v971, 0.0
      %v982 = vmax.f32 %v972, 0.0
      %v983 = vmax.f32 %v973, 0.0
      %v984 = vmax.f32 %v974, 0.0
      %v985 = vmax.f32 %v975, 0.0
      %v986 = vmax.f32 %v976, 0.0
      %v987 = vmax.f32 %v977, 0.0
      %v988 = vld [vmem:[%s3] sm:$0xff]
      %v989 = vld [vmem:[%s3 + $0x8] sm:$0xff]
      %v990 = vld [vmem:[%s3 + $0x10] sm:$0xff]
      %v991 = vld [vmem:[%s3 + $0x18] sm:$0xff]
      %v992 = vld [vmem:[%s3 + $0x20] sm:$0xff]
      %v993 = vld [vmem:[%s3 + $0x28] sm:$0xff]
      %v994 = vld [vmem:[%s3 + $0x30] sm:$0xff]
      %v995 = vld [vmem:[%s3 + $0x38] sm:$0xff]
      %v996 = vld [vmem:[%s3 + $0x40] sm:$0xff]
      %v997 = vld [vmem:[%s3 + $0x48] sm:$0xff]
      %999 = vset.pattern.permute.xlu0 0
      %1000 = vperm.xlu0 %999, %v988
      %v1001 = vpop.permute.xlu0 %1000
      %1004 = vset.pattern.permute.xlu0 0
      %1005 = vperm.xlu0 %1004, %v989
      %v1006 = vpop.permute.xlu0 %1005
      %1009 = vset.pattern.permute.xlu0 0
      %1010 = vperm.xlu0 %1009, %v990
      %v1011 = vpop.permute.xlu0 %1010
      %1014 = vset.pattern.permute.xlu0 0
      %1015 = vperm.xlu0 %1014, %v991
      %v1016 = vpop.permute.xlu0 %1015
      %1019 = vset.pattern.permute.xlu0 0
      %1020 = vperm.xlu0 %1019, %v992
      %v1021 = vpop.permute.xlu0 %1020
      %1024 = vset.pattern.permute.xlu0 0
      %1025 = vperm.xlu0 %1024, %v993
      %v1026 = vpop.permute.xlu0 %1025
      %1029 = vset.pattern.permute.xlu0 0
      %1030 = vperm.xlu0 %1029, %v994
      %v1031 = vpop.permute.xlu0 %1030
      %1034 = vset.pattern.permute.xlu0 0
      %1035 = vperm.xlu0 %1034, %v995
      %v1036 = vpop.permute.xlu0 %1035
      %1039 = vset.pattern.permute.xlu0 0
      %1040 = vperm.xlu0 %1039, %v996
      %v1041 = vpop.permute.xlu0 %1040
      %1044 = vset.pattern.permute.xlu0 0
      %1045 = vperm.xlu0 %1044, %v997
      %v1046 = vpop.permute.xlu0 %1045
      %v1048 = vmul.f32 %v978, %v1001
      %v1049 = vmul.f32 %v979, %v1006
      %v1050 = vmul.f32 %v980, %v1011
      %v1051 = vmul.f32 %v981, %v1016
      %v1052 = vmul.f32 %v982, %v1021
      %v1053 = vmul.f32 %v983, %v1026
      %v1054 = vmul.f32 %v984, %v1031
      %v1055 = vmul.f32 %v985, %v1036
      %v1056 = vmul.f32 %v986, %v1041
      %v1057 = vmul.f32 %v987, %v1046
      %vm1058 = vcmask 64512
      %1059 = vst.msk [vmem:[#allocation2] sm:$0xff] %vm1058, 0.0
      %1060 = vst.msk [vmem:[#allocation2 + $0x8] sm:$0xff] %vm1058, 0.0
      %1061 = vst.msk [vmem:[#allocation2 + $0x10] sm:$0xff] %vm1058, 0.0
      %1062 = vst.msk [vmem:[#allocation2 + $0x18] sm:$0xff] %vm1058, 0.0
      %1063 = vst.msk [vmem:[#allocation2 + $0x20] sm:$0xff] %vm1058, 0.0
      %1064 = vst.msk [vmem:[#allocation2 + $0x28] sm:$0xff] %vm1058, 0.0
      %1065 = vst.msk [vmem:[#allocation2 + $0x30] sm:$0xff] %vm1058, 0.0
      %1066 = vst.msk [vmem:[#allocation2 + $0x38] sm:$0xff] %vm1058, 0.0
      %1067 = vst.msk [vmem:[#allocation2 + $0x40] sm:$0xff] %vm1058, 0.0
      %1068 = vst.msk [vmem:[#allocation2 + $0x48] sm:$0xff] %vm1058, 0.0
      %1069 = vst.msk [vmem:[#allocation2 + $0x50] sm:$0xff] %vm1058, 0.0
      %1070 = vst.msk [vmem:[#allocation2 + $0x58] sm:$0xff] %vm1058, 0.0
      %vm1071 = vcmask 62464
      %1072 = vst.msk [vmem:[#allocation2 + $0x60] sm:$0x3f] %vm1071, 0.0
      %1073 = vst.msk [vmem:[#allocation2 + $0xb] sm:$0xff] %vm1058, %v1048
      %1074 = vst.msk [vmem:[#allocation2 + $0x13] sm:$0xff] %vm1058, %v1049
      %1075 = vst.msk [vmem:[#allocation2 + $0x1b] sm:$0xff] %vm1058, %v1050
      %1076 = vst.msk [vmem:[#allocation2 + $0x23] sm:$0xff] %vm1058, %v1051
      %1077 = vst.msk [vmem:[#allocation2 + $0x2b] sm:$0xff] %vm1058, %v1052
      %1078 = vst.msk [vmem:[#allocation2 + $0x33] sm:$0xff] %vm1058, %v1053
      %1079 = vst.msk [vmem:[#allocation2 + $0x3b] sm:$0xff] %vm1058, %v1054
      %1080 = vst.msk [vmem:[#allocation2 + $0x43] sm:$0xff] %vm1058, %v1055
      %1081 = vst.msk [vmem:[#allocation2 + $0x4b] sm:$0xff] %vm1058, %v1056
      %1082 = vst.msk [vmem:[#allocation2 + $0x53] sm:$0xff] %vm1058, %v1057
      %v1083 = vld [vmem:[#allocation2] sm:$0xff]
      %v1084 = vld [vmem:[#allocation2 + $0x8] sm:$0xff]
      %v1085 = vld [vmem:[#allocation2 + $0x10] sm:$0xff]
      %v1086 = vld [vmem:[#allocation2 + $0x18] sm:$0xff]
      %v1087 = vld [vmem:[#allocation2 + $0x20] sm:$0xff]
      %v1088 = vld [vmem:[#allocation2 + $0x28] sm:$0xff]
      %v1089 = vld [vmem:[#allocation2 + $0x30] sm:$0xff]
      %v1090 = vld [vmem:[#allocation2 + $0x38] sm:$0xff]
      %v1091 = vld [vmem:[#allocation2 + $0x40] sm:$0xff]
      %v1092 = vld [vmem:[#allocation2 + $0x48] sm:$0xff]
      %v1093 = vld [vmem:[%s4] sm:$0xff]
      %v1094 = vld [vmem:[#allocation2 + $0x1] sm:$0xff]
      %v1095 = vld [vmem:[#allocation2 + $0x9] sm:$0xff]
      %v1096 = vld [vmem:[#allocation2 + $0x11] sm:$0xff]
      %v1097 = vld [vmem:[#allocation2 + $0x19] sm:$0xff]
      %v1098 = vld [vmem:[#allocation2 + $0x21] sm:$0xff]
      %v1099 = vld [vmem:[#allocation2 + $0x29] sm:$0xff]
      %v1100 = vld [vmem:[#allocation2 + $0x31] sm:$0xff]
      %v1101 = vld [vmem:[#allocation2 + $0x39] sm:$0xff]
      %v1102 = vld [vmem:[#allocation2 + $0x41] sm:$0xff]
      %v1103 = vld [vmem:[#allocation2 + $0x49] sm:$0xff]
      %s1104 = scalar_lea.vmem %s4, 8
      %v1105 = vld [vmem:[%s1104] sm:$0xff]
      %v1107 = vsel %vm1058, %v1094, 0
      %v1110 = vsel %vm1058, %v1095, 0
      %v1113 = vsel %vm1058, %v1096, 0
      %v1116 = vsel %vm1058, %v1097, 0
      %v1119 = vsel %vm1058, %v1098, 0
      %v1122 = vsel %vm1058, %v1099, 0
      %v1125 = vsel %vm1058, %v1100, 0
      %v1128 = vsel %vm1058, %v1101, 0
      %v1131 = vsel %vm1058, %v1102, 0
      %v1134 = vsel %vm1058, %v1103, 0
      %1136 = vmatprep.subr.mxu0 0.0
      %1137 = vmatpush1.msra.mxu0 0.0
      %1138 = vmatprep.subr.mxu0 0.0
      %1139 = vmatpush1.msra.mxu0 0.0
      %1140 = vmatprep.subr.mxu0 0.0
      %1141 = vmatpush1.msra.mxu0 0.0
      %1142 = vmatprep.subr.mxu0 0.0
      %1143 = vmatpush1.msra.mxu0 0.0
      %1144 = vmatprep.subr.mxu0 0.0
      %1145 = vmatpush1.msra.mxu0 0.0
      %1146 = vmatprep.subr.mxu0 0.0
      %1147 = vmatpush1.msra.mxu0 0.0
      %1148 = vmatprep.subr.mxu0 0.0
      %1149 = vmatpush1.msra.mxu0 0.0
      %1150 = vmatprep.subr.mxu0 0.0
      %1151 = vmatpush1.msra.mxu0 0.0
      %1152 = vmatprep.subr.mxu0 0.0
      %1153 = vmatpush1.msra.mxu0 0.0
      %1154 = vmatprep.subr.mxu0 0.0
      %1155 = vmatpush1.msra.mxu0 0.0
      %1156 = vmatprep.subr.mxu0 0.0
      %1157 = vmatpush1.msra.mxu0 0.0
      %1158 = vmatprep.subr.mxu0 0.0
      %1159 = vmatpush1.msra.mxu0 0.0
      %1160 = vmatprep.subr.mxu0 0.0
      %1161 = vmatpush1.msra.mxu0 0.0
      %1162 = vmatprep.subr.mxu0 0.0
      %1163 = vmatpush1.msra.mxu0 0.0
      %1164 = vmatprep.subr.mxu0 0.0
      %1165 = vmatpush1.msra.mxu0 0.0
      %1166 = vmatprep.subr.mxu0 0.0
      %1167 = vmatpush1.msra.mxu0 %v1105
      %1168 = vmatprep.subr.mxu0 0.0
      %1169 = vmatpush2.msra.mxu0 0.0
      %1170 = vmatprep.subr.mxu0 0.0
      %1171 = vmatpush2.msra.mxu0 0.0
      %1172 = vmatprep.subr.mxu0 0.0
      %1173 = vmatpush2.msra.mxu0 0.0
      %1174 = vmatprep.subr.mxu0 0.0
      %1175 = vmatpush2.msra.mxu0 0.0
      %1176 = vmatprep.subr.mxu0 0.0
      %1177 = vmatpush2.msra.mxu0 0.0
      %1178 = vmatprep.subr.mxu0 0.0
      %1179 = vmatpush2.msra.mxu0 0.0
      %1180 = vmatprep.subr.mxu0 0.0
      %1181 = vmatpush2.msra.mxu0 0.0
      %1182 = vmatprep.subr.mxu0 0.0
      %1183 = vmatpush2.msra.mxu0 0.0
      %1184 = vmatprep.subr.mxu0 0.0
      %1185 = vmatpush2.msra.mxu0 0.0
      %1186 = vmatprep.subr.mxu0 0.0
      %1187 = vmatpush2.msra.mxu0 0.0
      %1188 = vmatprep.subr.mxu0 0.0
      %1189 = vmatpush2.msra.mxu0 0.0
      %1190 = vmatprep.subr.mxu0 0.0
      %1191 = vmatpush2.msra.mxu0 0.0
      %1192 = vmatprep.subr.mxu0 0.0
      %1193 = vmatpush2.msra.mxu0 0.0
      %1194 = vmatprep.subr.mxu0 0.0
      %1195 = vmatpush2.msra.mxu0 0.0
      %1196 = vmatprep.subr.mxu0 0.0
      %1197 = vmatpush2.msra.mxu0 0.0
      %1198 = vmatprep.subr.mxu0 0.0
      %1199 = vmatpush2.msra.mxu0 0.0
      %1200 = vmatprep.mubr.f32.mxu0 0.0
      %1201 = vmatmul.mubr.f32.gmra.mxu0 %v1107
      %v1202 = vpop.f32.mrf.mxu0
      %v1203 = vadd.f32 0.0, %v1202
      %v1204 = vpop.f32.mrf.mxu0
      %1205 = vmatprep.mubr.f32.mxu0 0.0
      %1206 = vmatmul.mubr.f32.gmra.mxu0 %v1110
      %v1207 = vpop.f32.mrf.mxu0
      %v1208 = vadd.f32 0.0, %v1207
      %v1209 = vpop.f32.mrf.mxu0
      %1210 = vmatprep.mubr.f32.mxu0 0.0
      %1211 = vmatmul.mubr.f32.gmra.mxu0 %v1113
      %v1212 = vpop.f32.mrf.mxu0
      %v1213 = vadd.f32 0.0, %v1212
      %v1214 = vpop.f32.mrf.mxu0
      %1215 = vmatprep.mubr.f32.mxu0 0.0
      %1216 = vmatmul.mubr.f32.gmra.mxu0 %v1116
      %v1217 = vpop.f32.mrf.mxu0
      %v1218 = vadd.f32 0.0, %v1217
      %v1219 = vpop.f32.mrf.mxu0
      %1220 = vmatprep.mubr.f32.mxu0 0.0
      %1221 = vmatmul.mubr.f32.gmra.mxu0 %v1119
      %v1222 = vpop.f32.mrf.mxu0
      %v1223 = vadd.f32 0.0, %v1222
      %v1224 = vpop.f32.mrf.mxu0
      %1225 = vmatprep.mubr.f32.mxu0 0.0
      %1226 = vmatmul.mubr.f32.gmra.mxu0 %v1122
      %v1227 = vpop.f32.mrf.mxu0
      %v1228 = vadd.f32 0.0, %v1227
      %v1229 = vpop.f32.mrf.mxu0
      %1230 = vmatprep.mubr.f32.mxu0 0.0
      %1231 = vmatmul.mubr.f32.gmra.mxu0 %v1125
      %v1232 = vpop.f32.mrf.mxu0
      %v1233 = vadd.f32 0.0, %v1232
      %v1234 = vpop.f32.mrf.mxu0
      %1235 = vmatprep.mubr.f32.mxu0 0.0
      %1236 = vmatmul.mubr.f32.gmra.mxu0 %v1128
      %v1237 = vpop.f32.mrf.mxu0
      %v1238 = vadd.f32 0.0, %v1237
      %v1239 = vpop.f32.mrf.mxu0
      %1240 = vmatprep.mubr.f32.mxu0 0.0
      %1241 = vmatmul.mubr.f32.gmra.mxu0 %v1131
      %v1242 = vpop.f32.mrf.mxu0
      %v1243 = vadd.f32 0.0, %v1242
      %v1244 = vpop.f32.mrf.mxu0
      %1245 = vmatprep.mubr.f32.mxu0 0.0
      %1246 = vmatmul.mubr.f32.gmra.mxu0 %v1134
      %v1247 = vpop.f32.mrf.mxu0
      %v1248 = vadd.f32 0.0, %v1247
      %v1249 = vpop.f32.mrf.mxu0
      %1250 = vdwg.mxu0
      %v1252 = vsel %vm1058, %v1083, 0
      %v1255 = vsel %vm1058, %v1084, 0
      %v1258 = vsel %vm1058, %v1085, 0
      %v1261 = vsel %vm1058, %v1086, 0
      %v1264 = vsel %vm1058, %v1087, 0
      %v1267 = vsel %vm1058, %v1088, 0
      %v1270 = vsel %vm1058, %v1089, 0
      %v1273 = vsel %vm1058, %v1090, 0
      %v1276 = vsel %vm1058, %v1091, 0
      %v1279 = vsel %vm1058, %v1092, 0
      %1281 = vmatprep.subr.mxu0 0.0
      %1282 = vmatpush1.msra.mxu0 0.0
      %1283 = vmatprep.subr.mxu0 0.0
      %1284 = vmatpush1.msra.mxu0 0.0
      %1285 = vmatprep.subr.mxu0 0.0
      %1286 = vmatpush1.msra.mxu0 0.0
      %1287 = vmatprep.subr.mxu0 0.0
      %1288 = vmatpush1.msra.mxu0 0.0
      %1289 = vmatprep.subr.mxu0 0.0
      %1290 = vmatpush1.msra.mxu0 0.0
      %1291 = vmatprep.subr.mxu0 0.0
      %1292 = vmatpush1.msra.mxu0 0.0
      %1293 = vmatprep.subr.mxu0 0.0
      %1294 = vmatpush1.msra.mxu0 0.0
      %1295 = vmatprep.subr.mxu0 0.0
      %1296 = vmatpush1.msra.mxu0 0.0
      %1297 = vmatprep.subr.mxu0 0.0
      %1298 = vmatpush1.msra.mxu0 0.0
      %1299 = vmatprep.subr.mxu0 0.0
      %1300 = vmatpush1.msra.mxu0 0.0
      %1301 = vmatprep.subr.mxu0 0.0
      %1302 = vmatpush1.msra.mxu0 0.0
      %1303 = vmatprep.subr.mxu0 0.0
      %1304 = vmatpush1.msra.mxu0 0.0
      %1305 = vmatprep.subr.mxu0 0.0
      %1306 = vmatpush1.msra.mxu0 0.0
      %1307 = vmatprep.subr.mxu0 0.0
      %1308 = vmatpush1.msra.mxu0 0.0
      %1309 = vmatprep.subr.mxu0 0.0
      %1310 = vmatpush1.msra.mxu0 0.0
      %1311 = vmatprep.subr.mxu0 0.0
      %1312 = vmatpush1.msra.mxu0 %v1093
      %1313 = vmatprep.subr.mxu0 0.0
      %1314 = vmatpush2.msra.mxu0 0.0
      %1315 = vmatprep.subr.mxu0 0.0
      %1316 = vmatpush2.msra.mxu0 0.0
      %1317 = vmatprep.subr.mxu0 0.0
      %1318 = vmatpush2.msra.mxu0 0.0
      %1319 = vmatprep.subr.mxu0 0.0
      %1320 = vmatpush2.msra.mxu0 0.0
      %1321 = vmatprep.subr.mxu0 0.0
      %1322 = vmatpush2.msra.mxu0 0.0
      %1323 = vmatprep.subr.mxu0 0.0
      %1324 = vmatpush2.msra.mxu0 0.0
      %1325 = vmatprep.subr.mxu0 0.0
      %1326 = vmatpush2.msra.mxu0 0.0
      %1327 = vmatprep.subr.mxu0 0.0
      %1328 = vmatpush2.msra.mxu0 0.0
      %1329 = vmatprep.subr.mxu0 0.0
      %1330 = vmatpush2.msra.mxu0 0.0
      %1331 = vmatprep.subr.mxu0 0.0
      %1332 = vmatpush2.msra.mxu0 0.0
      %1333 = vmatprep.subr.mxu0 0.0
      %1334 = vmatpush2.msra.mxu0 0.0
      %1335 = vmatprep.subr.mxu0 0.0
      %1336 = vmatpush2.msra.mxu0 0.0
      %1337 = vmatprep.subr.mxu0 0.0
      %1338 = vmatpush2.msra.mxu0 0.0
      %1339 = vmatprep.subr.mxu0 0.0
      %1340 = vmatpush2.msra.mxu0 0.0
      %1341 = vmatprep.subr.mxu0 0.0
      %1342 = vmatpush2.msra.mxu0 0.0
      %1343 = vmatprep.subr.mxu0 0.0
      %1344 = vmatpush2.msra.mxu0 0.0
      %1345 = vmatprep.mubr.f32.mxu0 0.0
      %1346 = vmatmul.mubr.f32.gmra.mxu0 %v1252
      %v1347 = vpop.f32.mrf.mxu0
      %v1348 = vadd.f32 %v1203, %v1347
      %v1349 = vpop.f32.mrf.mxu0
      %1350 = vmatprep.mubr.f32.mxu0 0.0
      %1351 = vmatmul.mubr.f32.gmra.mxu0 %v1255
      %v1352 = vpop.f32.mrf.mxu0
      %v1353 = vadd.f32 %v1208, %v1352
      %v1354 = vpop.f32.mrf.mxu0
      %1355 = vmatprep.mubr.f32.mxu0 0.0
      %1356 = vmatmul.mubr.f32.gmra.mxu0 %v1258
      %v1357 = vpop.f32.mrf.mxu0
      %v1358 = vadd.f32 %v1213, %v1357
      %v1359 = vpop.f32.mrf.mxu0
      %1360 = vmatprep.mubr.f32.mxu0 0.0
      %1361 = vmatmul.mubr.f32.gmra.mxu0 %v1261
      %v1362 = vpop.f32.mrf.mxu0
      %v1363 = vadd.f32 %v1218, %v1362
      %v1364 = vpop.f32.mrf.mxu0
      %1365 = vmatprep.mubr.f32.mxu0 0.0
      %1366 = vmatmul.mubr.f32.gmra.mxu0 %v1264
      %v1367 = vpop.f32.mrf.mxu0
      %v1368 = vadd.f32 %v1223, %v1367
      %v1369 = vpop.f32.mrf.mxu0
      %1370 = vmatprep.mubr.f32.mxu0 0.0
      %1371 = vmatmul.mubr.f32.gmra.mxu0 %v1267
      %v1372 = vpop.f32.mrf.mxu0
      %v1373 = vadd.f32 %v1228, %v1372
      %v1374 = vpop.f32.mrf.mxu0
      %1375 = vmatprep.mubr.f32.mxu0 0.0
      %1376 = vmatmul.mubr.f32.gmra.mxu0 %v1270
      %v1377 = vpop.f32.mrf.mxu0
      %v1378 = vadd.f32 %v1233, %v1377
      %v1379 = vpop.f32.mrf.mxu0
      %1380 = vmatprep.mubr.f32.mxu0 0.0
      %1381 = vmatmul.mubr.f32.gmra.mxu0 %v1273
      %v1382 = vpop.f32.mrf.mxu0
      %v1383 = vadd.f32 %v1238, %v1382
      %v1384 = vpop.f32.mrf.mxu0
      %1385 = vmatprep.mubr.f32.mxu0 0.0
      %1386 = vmatmul.mubr.f32.gmra.mxu0 %v1276
      %v1387 = vpop.f32.mrf.mxu0
      %v1388 = vadd.f32 %v1243, %v1387
      %v1389 = vpop.f32.mrf.mxu0
      %1390 = vmatprep.mubr.f32.mxu0 0.0
      %1391 = vmatmul.mubr.f32.gmra.mxu0 %v1279
      %v1392 = vpop.f32.mrf.mxu0
      %v1393 = vadd.f32 %v1248, %v1392
      %v1394 = vpop.f32.mrf.mxu0
      %1395 = vdwg.mxu0
      %v1396 = vld [vmem:[#allocation2 + $0x2] sm:$0xff]
      %v1397 = vld [vmem:[#allocation2 + $0xa] sm:$0xff]
      %v1398 = vld [vmem:[#allocation2 + $0x12] sm:$0xff]
      %v1399 = vld [vmem:[#allocation2 + $0x1a] sm:$0xff]
      %v1400 = vld [vmem:[#allocation2 + $0x22] sm:$0xff]
      %v1401 = vld [vmem:[#allocation2 + $0x2a] sm:$0xff]
      %v1402 = vld [vmem:[#allocation2 + $0x32] sm:$0xff]
      %v1403 = vld [vmem:[#allocation2 + $0x3a] sm:$0xff]
      %v1404 = vld [vmem:[#allocation2 + $0x42] sm:$0xff]
      %v1405 = vld [vmem:[#allocation2 + $0x4a] sm:$0xff]
      %s1406 = scalar_lea.vmem %s4, 16
      %v1407 = vld [vmem:[%s1406] sm:$0xff]
      %v1409 = vsel %vm1058, %v1396, 0
      %v1412 = vsel %vm1058, %v1397, 0
      %v1415 = vsel %vm1058, %v1398, 0
      %v1418 = vsel %vm1058, %v1399, 0
      %v1421 = vsel %vm1058, %v1400, 0
      %v1424 = vsel %vm1058, %v1401, 0
      %v1427 = vsel %vm1058, %v1402, 0
      %v1430 = vsel %vm1058, %v1403, 0
      %v1433 = vsel %vm1058, %v1404, 0
      %v1436 = vsel %vm1058, %v1405, 0
      %1438 = vmatprep.subr.mxu0 0.0
      %1439 = vmatpush1.msra.mxu0 0.0
      %1440 = vmatprep.subr.mxu0 0.0
      %1441 = vmatpush1.msra.mxu0 0.0
      %1442 = vmatprep.subr.mxu0 0.0
      %1443 = vmatpush1.msra.mxu0 0.0
      %1444 = vmatprep.subr.mxu0 0.0
      %1445 = vmatpush1.msra.mxu0 0.0
      %1446 = vmatprep.subr.mxu0 0.0
      %1447 = vmatpush1.msra.mxu0 0.0
      %1448 = vmatprep.subr.mxu0 0.0
      %1449 = vmatpush1.msra.mxu0 0.0
      %1450 = vmatprep.subr.mxu0 0.0
      %1451 = vmatpush1.msra.mxu0 0.0
      %1452 = vmatprep.subr.mxu0 0.0
      %1453 = vmatpush1.msra.mxu0 0.0
      %1454 = vmatprep.subr.mxu0 0.0
      %1455 = vmatpush1.msra.mxu0 0.0
      %1456 = vmatprep.subr.mxu0 0.0
      %1457 = vmatpush1.msra.mxu0 0.0
      %1458 = vmatprep.subr.mxu0 0.0
      %1459 = vmatpush1.msra.mxu0 0.0
      %1460 = vmatprep.subr.mxu0 0.0
      %1461 = vmatpush1.msra.mxu0 0.0
      %1462 = vmatprep.subr.mxu0 0.0
      %1463 = vmatpush1.msra.mxu0 0.0
      %1464 = vmatprep.subr.mxu0 0.0
      %1465 = vmatpush1.msra.mxu0 0.0
      %1466 = vmatprep.subr.mxu0 0.0
      %1467 = vmatpush1.msra.mxu0 0.0
      %1468 = vmatprep.subr.mxu0 0.0
      %1469 = vmatpush1.msra.mxu0 %v1407
      %1470 = vmatprep.subr.mxu0 0.0
      %1471 = vmatpush2.msra.mxu0 0.0
      %1472 = vmatprep.subr.mxu0 0.0
      %1473 = vmatpush2.msra.mxu0 0.0
      %1474 = vmatprep.subr.mxu0 0.0
      %1475 = vmatpush2.msra.mxu0 0.0
      %1476 = vmatprep.subr.mxu0 0.0
      %1477 = vmatpush2.msra.mxu0 0.0
      %1478 = vmatprep.subr.mxu0 0.0
      %1479 = vmatpush2.msra.mxu0 0.0
      %1480 = vmatprep.subr.mxu0 0.0
      %1481 = vmatpush2.msra.mxu0 0.0
      %1482 = vmatprep.subr.mxu0 0.0
      %1483 = vmatpush2.msra.mxu0 0.0
      %1484 = vmatprep.subr.mxu0 0.0
      %1485 = vmatpush2.msra.mxu0 0.0
      %1486 = vmatprep.subr.mxu0 0.0
      %1487 = vmatpush2.msra.mxu0 0.0
      %1488 = vmatprep.subr.mxu0 0.0
      %1489 = vmatpush2.msra.mxu0 0.0
      %1490 = vmatprep.subr.mxu0 0.0
      %1491 = vmatpush2.msra.mxu0 0.0
      %1492 = vmatprep.subr.mxu0 0.0
      %1493 = vmatpush2.msra.mxu0 0.0
      %1494 = vmatprep.subr.mxu0 0.0
      %1495 = vmatpush2.msra.mxu0 0.0
      %1496 = vmatprep.subr.mxu0 0.0
      %1497 = vmatpush2.msra.mxu0 0.0
      %1498 = vmatprep.subr.mxu0 0.0
      %1499 = vmatpush2.msra.mxu0 0.0
      %1500 = vmatprep.subr.mxu0 0.0
      %1501 = vmatpush2.msra.mxu0 0.0
      %1502 = vmatprep.mubr.f32.mxu0 0.0
      %1503 = vmatmul.mubr.f32.gmra.mxu0 %v1409
      %v1504 = vpop.f32.mrf.mxu0
      %v1505 = vadd.f32 0.0, %v1504
      %v1506 = vpop.f32.mrf.mxu0
      %1507 = vmatprep.mubr.f32.mxu0 0.0
      %1508 = vmatmul.mubr.f32.gmra.mxu0 %v1412
      %v1509 = vpop.f32.mrf.mxu0
      %v1510 = vadd.f32 0.0, %v1509
      %v1511 = vpop.f32.mrf.mxu0
      %1512 = vmatprep.mubr.f32.mxu0 0.0
      %1513 = vmatmul.mubr.f32.gmra.mxu0 %v1415
      %v1514 = vpop.f32.mrf.mxu0
      %v1515 = vadd.f32 0.0, %v1514
      %v1516 = vpop.f32.mrf.mxu0
      %1517 = vmatprep.mubr.f32.mxu0 0.0
      %1518 = vmatmul.mubr.f32.gmra.mxu0 %v1418
      %v1519 = vpop.f32.mrf.mxu0
      %v1520 = vadd.f32 0.0, %v1519
      %v1521 = vpop.f32.mrf.mxu0
      %1522 = vmatprep.mubr.f32.mxu0 0.0
      %1523 = vmatmul.mubr.f32.gmra.mxu0 %v1421
      %v1524 = vpop.f32.mrf.mxu0
      %v1525 = vadd.f32 0.0, %v1524
      %v1526 = vpop.f32.mrf.mxu0
      %1527 = vmatprep.mubr.f32.mxu0 0.0
      %1528 = vmatmul.mubr.f32.gmra.mxu0 %v1424
      %v1529 = vpop.f32.mrf.mxu0
      %v1530 = vadd.f32 0.0, %v1529
      %v1531 = vpop.f32.mrf.mxu0
      %1532 = vmatprep.mubr.f32.mxu0 0.0
      %1533 = vmatmul.mubr.f32.gmra.mxu0 %v1427
      %v1534 = vpop.f32.mrf.mxu0
      %v1535 = vadd.f32 0.0, %v1534
      %v1536 = vpop.f32.mrf.mxu0
      %1537 = vmatprep.mubr.f32.mxu0 0.0
      %1538 = vmatmul.mubr.f32.gmra.mxu0 %v1430
      %v1539 = vpop.f32.mrf.mxu0
      %v1540 = vadd.f32 0.0, %v1539
      %v1541 = vpop.f32.mrf.mxu0
      %1542 = vmatprep.mubr.f32.mxu0 0.0
      %1543 = vmatmul.mubr.f32.gmra.mxu0 %v1433
      %v1544 = vpop.f32.mrf.mxu0
      %v1545 = vadd.f32 0.0, %v1544
      %v1546 = vpop.f32.mrf.mxu0
      %1547 = vmatprep.mubr.f32.mxu0 0.0
      %1548 = vmatmul.mubr.f32.gmra.mxu0 %v1436
      %v1549 = vpop.f32.mrf.mxu0
      %v1550 = vadd.f32 0.0, %v1549
      %v1551 = vpop.f32.mrf.mxu0
      %1552 = vdwg.mxu0
      %v1553 = vadd.f32 %v1348, %v1505
      %v1554 = vadd.f32 %v1353, %v1510
      %v1555 = vadd.f32 %v1358, %v1515
      %v1556 = vadd.f32 %v1363, %v1520
      %v1557 = vadd.f32 %v1368, %v1525
      %v1558 = vadd.f32 %v1373, %v1530
      %v1559 = vadd.f32 %v1378, %v1535
      %v1560 = vadd.f32 %v1383, %v1540
      %v1561 = vadd.f32 %v1388, %v1545
      %v1562 = vadd.f32 %v1393, %v1550
      %v1563 = vld [vmem:[#allocation2 + $0xa] sm:$0xff]
      %v1564 = vld [vmem:[#allocation2 + $0x12] sm:$0xff]
      %v1565 = vld [vmem:[#allocation2 + $0x1a] sm:$0xff]
      %v1566 = vld [vmem:[#allocation2 + $0x22] sm:$0xff]
      %v1567 = vld [vmem:[#allocation2 + $0x2a] sm:$0xff]
      %v1568 = vld [vmem:[#allocation2 + $0x32] sm:$0xff]
      %v1569 = vld [vmem:[#allocation2 + $0x3a] sm:$0xff]
      %v1570 = vld [vmem:[#allocation2 + $0x42] sm:$0xff]
      %v1571 = vld [vmem:[#allocation2 + $0x4a] sm:$0xff]
      %v1572 = vld [vmem:[#allocation2 + $0x52] sm:$0xff]
      %s1573 = scalar_lea.vmem %s4, 24
      %v1574 = vld [vmem:[%s1573] sm:$0xff]
      %v1576 = vsel %vm1058, %v1563, 0
      %v1579 = vsel %vm1058, %v1564, 0
      %v1582 = vsel %vm1058, %v1565, 0
      %v1585 = vsel %vm1058, %v1566, 0
      %v1588 = vsel %vm1058, %v1567, 0
      %v1591 = vsel %vm1058, %v1568, 0
      %v1594 = vsel %vm1058, %v1569, 0
      %v1597 = vsel %vm1058, %v1570, 0
      %v1600 = vsel %vm1058, %v1571, 0
      %v1603 = vsel %vm1058, %v1572, 0
      %1605 = vmatprep.subr.mxu0 0.0
      %1606 = vmatpush1.msra.mxu0 0.0
      %1607 = vmatprep.subr.mxu0 0.0
      %1608 = vmatpush1.msra.mxu0 0.0
      %1609 = vmatprep.subr.mxu0 0.0
      %1610 = vmatpush1.msra.mxu0 0.0
      %1611 = vmatprep.subr.mxu0 0.0
      %1612 = vmatpush1.msra.mxu0 0.0
      %1613 = vmatprep.subr.mxu0 0.0
      %1614 = vmatpush1.msra.mxu0 0.0
      %1615 = vmatprep.subr.mxu0 0.0
      %1616 = vmatpush1.msra.mxu0 0.0
      %1617 = vmatprep.subr.mxu0 0.0
      %1618 = vmatpush1.msra.mxu0 0.0
      %1619 = vmatprep.subr.mxu0 0.0
      %1620 = vmatpush1.msra.mxu0 0.0
      %1621 = vmatprep.subr.mxu0 0.0
      %1622 = vmatpush1.msra.mxu0 0.0
      %1623 = vmatprep.subr.mxu0 0.0
      %1624 = vmatpush1.msra.mxu0 0.0
      %1625 = vmatprep.subr.mxu0 0.0
      %1626 = vmatpush1.msra.mxu0 0.0
      %1627 = vmatprep.subr.mxu0 0.0
      %1628 = vmatpush1.msra.mxu0 0.0
      %1629 = vmatprep.subr.mxu0 0.0
      %1630 = vmatpush1.msra.mxu0 0.0
      %1631 = vmatprep.subr.mxu0 0.0
      %1632 = vmatpush1.msra.mxu0 0.0
      %1633 = vmatprep.subr.mxu0 0.0
      %1634 = vmatpush1.msra.mxu0 0.0
      %1635 = vmatprep.subr.mxu0 0.0
      %1636 = vmatpush1.msra.mxu0 %v1574
      %1637 = vmatprep.subr.mxu0 0.0
      %1638 = vmatpush2.msra.mxu0 0.0
      %1639 = vmatprep.subr.mxu0 0.0
      %1640 = vmatpush2.msra.mxu0 0.0
      %1641 = vmatprep.subr.mxu0 0.0
      %1642 = vmatpush2.msra.mxu0 0.0
      %1643 = vmatprep.subr.mxu0 0.0
      %1644 = vmatpush2.msra.mxu0 0.0
      %1645 = vmatprep.subr.mxu0 0.0
      %1646 = vmatpush2.msra.mxu0 0.0
      %1647 = vmatprep.subr.mxu0 0.0
      %1648 = vmatpush2.msra.mxu0 0.0
      %1649 = vmatprep.subr.mxu0 0.0
      %1650 = vmatpush2.msra.mxu0 0.0
      %1651 = vmatprep.subr.mxu0 0.0
      %1652 = vmatpush2.msra.mxu0 0.0
      %1653 = vmatprep.subr.mxu0 0.0
      %1654 = vmatpush2.msra.mxu0 0.0
      %1655 = vmatprep.subr.mxu0 0.0
      %1656 = vmatpush2.msra.mxu0 0.0
      %1657 = vmatprep.subr.mxu0 0.0
      %1658 = vmatpush2.msra.mxu0 0.0
      %1659 = vmatprep.subr.mxu0 0.0
      %1660 = vmatpush2.msra.mxu0 0.0
      %1661 = vmatprep.subr.mxu0 0.0
      %1662 = vmatpush2.msra.mxu0 0.0
      %1663 = vmatprep.subr.mxu0 0.0
      %1664 = vmatpush2.msra.mxu0 0.0
      %1665 = vmatprep.subr.mxu0 0.0
      %1666 = vmatpush2.msra.mxu0 0.0
      %1667 = vmatprep.subr.mxu0 0.0
      %1668 = vmatpush2.msra.mxu0 0.0
      %1669 = vmatprep.mubr.f32.mxu0 0.0
      %1670 = vmatmul.mubr.f32.gmra.mxu0 %v1576
      %v1671 = vpop.f32.mrf.mxu0
      %v1672 = vadd.f32 0.0, %v1671
      %v1673 = vpop.f32.mrf.mxu0
      %1674 = vmatprep.mubr.f32.mxu0 0.0
      %1675 = vmatmul.mubr.f32.gmra.mxu0 %v1579
      %v1676 = vpop.f32.mrf.mxu0
      %v1677 = vadd.f32 0.0, %v1676
      %v1678 = vpop.f32.mrf.mxu0
      %1679 = vmatprep.mubr.f32.mxu0 0.0
      %1680 = vmatmul.mubr.f32.gmra.mxu0 %v1582
      %v1681 = vpop.f32.mrf.mxu0
      %v1682 = vadd.f32 0.0, %v1681
      %v1683 = vpop.f32.mrf.mxu0
      %1684 = vmatprep.mubr.f32.mxu0 0.0
      %1685 = vmatmul.mubr.f32.gmra.mxu0 %v1585
      %v1686 = vpop.f32.mrf.mxu0
      %v1687 = vadd.f32 0.0, %v1686
      %v1688 = vpop.f32.mrf.mxu0
      %1689 = vmatprep.mubr.f32.mxu0 0.0
      %1690 = vmatmul.mubr.f32.gmra.mxu0 %v1588
      %v1691 = vpop.f32.mrf.mxu0
      %v1692 = vadd.f32 0.0, %v1691
      %v1693 = vpop.f32.mrf.mxu0
      %1694 = vmatprep.mubr.f32.mxu0 0.0
      %1695 = vmatmul.mubr.f32.gmra.mxu0 %v1591
      %v1696 = vpop.f32.mrf.mxu0
      %v1697 = vadd.f32 0.0, %v1696
      %v1698 = vpop.f32.mrf.mxu0
      %1699 = vmatprep.mubr.f32.mxu0 0.0
      %1700 = vmatmul.mubr.f32.gmra.mxu0 %v1594
      %v1701 = vpop.f32.mrf.mxu0
      %v1702 = vadd.f32 0.0, %v1701
      %v1703 = vpop.f32.mrf.mxu0
      %1704 = vmatprep.mubr.f32.mxu0 0.0
      %1705 = vmatmul.mubr.f32.gmra.mxu0 %v1597
      %v1706 = vpop.f32.mrf.mxu0
      %v1707 = vadd.f32 0.0, %v1706
      %v1708 = vpop.f32.mrf.mxu0
      %1709 = vmatprep.mubr.f32.mxu0 0.0
      %1710 = vmatmul.mubr.f32.gmra.mxu0 %v1600
      %v1711 = vpop.f32.mrf.mxu0
      %v1712 = vadd.f32 0.0, %v1711
      %v1713 = vpop.f32.mrf.mxu0
      %1714 = vmatprep.mubr.f32.mxu0 0.0
      %1715 = vmatmul.mubr.f32.gmra.mxu0 %v1603
      %v1716 = vpop.f32.mrf.mxu0
      %v1717 = vadd.f32 0.0, %v1716
      %v1718 = vpop.f32.mrf.mxu0
      %1719 = vdwg.mxu0
      %v1720 = vadd.f32 %v1553, %v1672
      %v1721 = vadd.f32 %v1554, %v1677
      %v1722 = vadd.f32 %v1555, %v1682
      %v1723 = vadd.f32 %v1556, %v1687
      %v1724 = vadd.f32 %v1557, %v1692
      %v1725 = vadd.f32 %v1558, %v1697
      %v1726 = vadd.f32 %v1559, %v1702
      %v1727 = vadd.f32 %v1560, %v1707
      %v1728 = vadd.f32 %v1561, %v1712
      %v1729 = vadd.f32 %v1562, %v1717
      %v1730 = vld [vmem:[#allocation2 + $0xb] sm:$0xff]
      %v1731 = vld [vmem:[#allocation2 + $0x13] sm:$0xff]
      %v1732 = vld [vmem:[#allocation2 + $0x1b] sm:$0xff]
      %v1733 = vld [vmem:[#allocation2 + $0x23] sm:$0xff]
      %v1734 = vld [vmem:[#allocation2 + $0x2b] sm:$0xff]
      %v1735 = vld [vmem:[#allocation2 + $0x33] sm:$0xff]
      %v1736 = vld [vmem:[#allocation2 + $0x3b] sm:$0xff]
      %v1737 = vld [vmem:[#allocation2 + $0x43] sm:$0xff]
      %v1738 = vld [vmem:[#allocation2 + $0x4b] sm:$0xff]
      %v1739 = vld [vmem:[#allocation2 + $0x53] sm:$0xff]
      %s1740 = scalar_lea.vmem %s4, 32
      %v1741 = vld [vmem:[%s1740] sm:$0xff]
      %v1743 = vsel %vm1058, %v1730, 0
      %v1746 = vsel %vm1058, %v1731, 0
      %v1749 = vsel %vm1058, %v1732, 0
      %v1752 = vsel %vm1058, %v1733, 0
      %v1755 = vsel %vm1058, %v1734, 0
      %v1758 = vsel %vm1058, %v1735, 0
      %v1761 = vsel %vm1058, %v1736, 0
      %v1764 = vsel %vm1058, %v1737, 0
      %v1767 = vsel %vm1058, %v1738, 0
      %v1770 = vsel %vm1058, %v1739, 0
      %1772 = vmatprep.subr.mxu0 0.0
      %1773 = vmatpush1.msra.mxu0 0.0
      %1774 = vmatprep.subr.mxu0 0.0
      %1775 = vmatpush1.msra.mxu0 0.0
      %1776 = vmatprep.subr.mxu0 0.0
      %1777 = vmatpush1.msra.mxu0 0.0
      %1778 = vmatprep.subr.mxu0 0.0
      %1779 = vmatpush1.msra.mxu0 0.0
      %1780 = vmatprep.subr.mxu0 0.0
      %1781 = vmatpush1.msra.mxu0 0.0
      %1782 = vmatprep.subr.mxu0 0.0
      %1783 = vmatpush1.msra.mxu0 0.0
      %1784 = vmatprep.subr.mxu0 0.0
      %1785 = vmatpush1.msra.mxu0 0.0
      %1786 = vmatprep.subr.mxu0 0.0
      %1787 = vmatpush1.msra.mxu0 0.0
      %1788 = vmatprep.subr.mxu0 0.0
      %1789 = vmatpush1.msra.mxu0 0.0
      %1790 = vmatprep.subr.mxu0 0.0
      %1791 = vmatpush1.msra.mxu0 0.0
      %1792 = vmatprep.subr.mxu0 0.0
      %1793 = vmatpush1.msra.mxu0 0.0
      %1794 = vmatprep.subr.mxu0 0.0
      %1795 = vmatpush1.msra.mxu0 0.0
      %1796 = vmatprep.subr.mxu0 0.0
      %1797 = vmatpush1.msra.mxu0 0.0
      %1798 = vmatprep.subr.mxu0 0.0
      %1799 = vmatpush1.msra.mxu0 0.0
      %1800 = vmatprep.subr.mxu0 0.0
      %1801 = vmatpush1.msra.mxu0 0.0
      %1802 = vmatprep.subr.mxu0 0.0
      %1803 = vmatpush1.msra.mxu0 %v1741
      %1804 = vmatprep.subr.mxu0 0.0
      %1805 = vmatpush2.msra.mxu0 0.0
      %1806 = vmatprep.subr.mxu0 0.0
      %1807 = vmatpush2.msra.mxu0 0.0
      %1808 = vmatprep.subr.mxu0 0.0
      %1809 = vmatpush2.msra.mxu0 0.0
      %1810 = vmatprep.subr.mxu0 0.0
      %1811 = vmatpush2.msra.mxu0 0.0
      %1812 = vmatprep.subr.mxu0 0.0
      %1813 = vmatpush2.msra.mxu0 0.0
      %1814 = vmatprep.subr.mxu0 0.0
      %1815 = vmatpush2.msra.mxu0 0.0
      %1816 = vmatprep.subr.mxu0 0.0
      %1817 = vmatpush2.msra.mxu0 0.0
      %1818 = vmatprep.subr.mxu0 0.0
      %1819 = vmatpush2.msra.mxu0 0.0
      %1820 = vmatprep.subr.mxu0 0.0
      %1821 = vmatpush2.msra.mxu0 0.0
      %1822 = vmatprep.subr.mxu0 0.0
      %1823 = vmatpush2.msra.mxu0 0.0
      %1824 = vmatprep.subr.mxu0 0.0
      %1825 = vmatpush2.msra.mxu0 0.0
      %1826 = vmatprep.subr.mxu0 0.0
      %1827 = vmatpush2.msra.mxu0 0.0
      %1828 = vmatprep.subr.mxu0 0.0
      %1829 = vmatpush2.msra.mxu0 0.0
      %1830 = vmatprep.subr.mxu0 0.0
      %1831 = vmatpush2.msra.mxu0 0.0
      %1832 = vmatprep.subr.mxu0 0.0
      %1833 = vmatpush2.msra.mxu0 0.0
      %1834 = vmatprep.subr.mxu0 0.0
      %1835 = vmatpush2.msra.mxu0 0.0
      %1836 = vmatprep.mubr.f32.mxu0 0.0
      %1837 = vmatmul.mubr.f32.gmra.mxu0 %v1743
      %v1838 = vpop.f32.mrf.mxu0
      %v1839 = vadd.f32 0.0, %v1838
      %v1840 = vpop.f32.mrf.mxu0
      %1841 = vmatprep.mubr.f32.mxu0 0.0
      %1842 = vmatmul.mubr.f32.gmra.mxu0 %v1746
      %v1843 = vpop.f32.mrf.mxu0
      %v1844 = vadd.f32 0.0, %v1843
      %v1845 = vpop.f32.mrf.mxu0
      %1846 = vmatprep.mubr.f32.mxu0 0.0
      %1847 = vmatmul.mubr.f32.gmra.mxu0 %v1749
      %v1848 = vpop.f32.mrf.mxu0
      %v1849 = vadd.f32 0.0, %v1848
      %v1850 = vpop.f32.mrf.mxu0
      %1851 = vmatprep.mubr.f32.mxu0 0.0
      %1852 = vmatmul.mubr.f32.gmra.mxu0 %v1752
      %v1853 = vpop.f32.mrf.mxu0
      %v1854 = vadd.f32 0.0, %v1853
      %v1855 = vpop.f32.mrf.mxu0
      %1856 = vmatprep.mubr.f32.mxu0 0.0
      %1857 = vmatmul.mubr.f32.gmra.mxu0 %v1755
      %v1858 = vpop.f32.mrf.mxu0
      %v1859 = vadd.f32 0.0, %v1858
      %v1860 = vpop.f32.mrf.mxu0
      %1861 = vmatprep.mubr.f32.mxu0 0.0
      %1862 = vmatmul.mubr.f32.gmra.mxu0 %v1758
      %v1863 = vpop.f32.mrf.mxu0
      %v1864 = vadd.f32 0.0, %v1863
      %v1865 = vpop.f32.mrf.mxu0
      %1866 = vmatprep.mubr.f32.mxu0 0.0
      %1867 = vmatmul.mubr.f32.gmra.mxu0 %v1761
      %v1868 = vpop.f32.mrf.mxu0
      %v1869 = vadd.f32 0.0, %v1868
      %v1870 = vpop.f32.mrf.mxu0
      %1871 = vmatprep.mubr.f32.mxu0 0.0
      %1872 = vmatmul.mubr.f32.gmra.mxu0 %v1764
      %v1873 = vpop.f32.mrf.mxu0
      %v1874 = vadd.f32 0.0, %v1873
      %v1875 = vpop.f32.mrf.mxu0
      %1876 = vmatprep.mubr.f32.mxu0 0.0
      %1877 = vmatmul.mubr.f32.gmra.mxu0 %v1767
      %v1878 = vpop.f32.mrf.mxu0
      %v1879 = vadd.f32 0.0, %v1878
      %v1880 = vpop.f32.mrf.mxu0
      %1881 = vmatprep.mubr.f32.mxu0 0.0
      %1882 = vmatmul.mubr.f32.gmra.mxu0 %v1770
      %v1883 = vpop.f32.mrf.mxu0
      %v1884 = vadd.f32 0.0, %v1883
      %v1885 = vpop.f32.mrf.mxu0
      %1886 = vdwg.mxu0
      %v1887 = vadd.f32 %v1720, %v1839
      %v1888 = vadd.f32 %v1721, %v1844
      %v1889 = vadd.f32 %v1722, %v1849
      %v1890 = vadd.f32 %v1723, %v1854
      %v1891 = vadd.f32 %v1724, %v1859
      %v1892 = vadd.f32 %v1725, %v1864
      %v1893 = vadd.f32 %v1726, %v1869
      %v1894 = vadd.f32 %v1727, %v1874
      %v1895 = vadd.f32 %v1728, %v1879
      %v1896 = vadd.f32 %v1729, %v1884
      %v1897 = vld [vmem:[#allocation2 + $0xc] sm:$0xff]
      %v1898 = vld [vmem:[#allocation2 + $0x14] sm:$0xff]
      %v1899 = vld [vmem:[#allocation2 + $0x1c] sm:$0xff]
      %v1900 = vld [vmem:[#allocation2 + $0x24] sm:$0xff]
      %v1901 = vld [vmem:[#allocation2 + $0x2c] sm:$0xff]
      %v1902 = vld [vmem:[#allocation2 + $0x34] sm:$0xff]
      %v1903 = vld [vmem:[#allocation2 + $0x3c] sm:$0xff]
      %v1904 = vld [vmem:[#allocation2 + $0x44] sm:$0xff]
      %v1905 = vld [vmem:[#allocation2 + $0x4c] sm:$0xff]
      %v1906 = vld [vmem:[#allocation2 + $0x54] sm:$0xff]
      %s1907 = scalar_lea.vmem %s4, 40
      %v1908 = vld [vmem:[%s1907] sm:$0xff]
      %v1910 = vsel %vm1058, %v1897, 0
      %v1913 = vsel %vm1058, %v1898, 0
      %v1916 = vsel %vm1058, %v1899, 0
      %v1919 = vsel %vm1058, %v1900, 0
      %v1922 = vsel %vm1058, %v1901, 0
      %v1925 = vsel %vm1058, %v1902, 0
      %v1928 = vsel %vm1058, %v1903, 0
      %v1931 = vsel %vm1058, %v1904, 0
      %v1934 = vsel %vm1058, %v1905, 0
      %v1937 = vsel %vm1058, %v1906, 0
      %1939 = vmatprep.subr.mxu0 0.0
      %1940 = vmatpush1.msra.mxu0 0.0
      %1941 = vmatprep.subr.mxu0 0.0
      %1942 = vmatpush1.msra.mxu0 0.0
      %1943 = vmatprep.subr.mxu0 0.0
      %1944 = vmatpush1.msra.mxu0 0.0
      %1945 = vmatprep.subr.mxu0 0.0
      %1946 = vmatpush1.msra.mxu0 0.0
      %1947 = vmatprep.subr.mxu0 0.0
      %1948 = vmatpush1.msra.mxu0 0.0
      %1949 = vmatprep.subr.mxu0 0.0
      %1950 = vmatpush1.msra.mxu0 0.0
      %1951 = vmatprep.subr.mxu0 0.0
      %1952 = vmatpush1.msra.mxu0 0.0
      %1953 = vmatprep.subr.mxu0 0.0
      %1954 = vmatpush1.msra.mxu0 0.0
      %1955 = vmatprep.subr.mxu0 0.0
      %1956 = vmatpush1.msra.mxu0 0.0
      %1957 = vmatprep.subr.mxu0 0.0
      %1958 = vmatpush1.msra.mxu0 0.0
      %1959 = vmatprep.subr.mxu0 0.0
      %1960 = vmatpush1.msra.mxu0 0.0
      %1961 = vmatprep.subr.mxu0 0.0
      %1962 = vmatpush1.msra.mxu0 0.0
      %1963 = vmatprep.subr.mxu0 0.0
      %1964 = vmatpush1.msra.mxu0 0.0
      %1965 = vmatprep.subr.mxu0 0.0
      %1966 = vmatpush1.msra.mxu0 0.0
      %1967 = vmatprep.subr.mxu0 0.0
      %1968 = vmatpush1.msra.mxu0 0.0
      %1969 = vmatprep.subr.mxu0 0.0
      %1970 = vmatpush1.msra.mxu0 %v1908
      %1971 = vmatprep.subr.mxu0 0.0
      %1972 = vmatpush2.msra.mxu0 0.0
      %1973 = vmatprep.subr.mxu0 0.0
      %1974 = vmatpush2.msra.mxu0 0.0
      %1975 = vmatprep.subr.mxu0 0.0
      %1976 = vmatpush2.msra.mxu0 0.0
      %1977 = vmatprep.subr.mxu0 0.0
      %1978 = vmatpush2.msra.mxu0 0.0
      %1979 = vmatprep.subr.mxu0 0.0
      %1980 = vmatpush2.msra.mxu0 0.0
      %1981 = vmatprep.subr.mxu0 0.0
      %1982 = vmatpush2.msra.mxu0 0.0
      %1983 = vmatprep.subr.mxu0 0.0
      %1984 = vmatpush2.msra.mxu0 0.0
      %1985 = vmatprep.subr.mxu0 0.0
      %1986 = vmatpush2.msra.mxu0 0.0
      %1987 = vmatprep.subr.mxu0 0.0
      %1988 = vmatpush2.msra.mxu0 0.0
      %1989 = vmatprep.subr.mxu0 0.0
      %1990 = vmatpush2.msra.mxu0 0.0
      %1991 = vmatprep.subr.mxu0 0.0
      %1992 = vmatpush2.msra.mxu0 0.0
      %1993 = vmatprep.subr.mxu0 0.0
      %1994 = vmatpush2.msra.mxu0 0.0
      %1995 = vmatprep.subr.mxu0 0.0
      %1996 = vmatpush2.msra.mxu0 0.0
      %1997 = vmatprep.subr.mxu0 0.0
      %1998 = vmatpush2.msra.mxu0 0.0
      %1999 = vmatprep.subr.mxu0 0.0
      %2000 = vmatpush2.msra.mxu0 0.0
      %2001 = vmatprep.subr.mxu0 0.0
      %2002 = vmatpush2.msra.mxu0 0.0
      %2003 = vmatprep.mubr.f32.mxu0 0.0
      %2004 = vmatmul.mubr.f32.gmra.mxu0 %v1910
      %v2005 = vpop.f32.mrf.mxu0
      %v2006 = vadd.f32 0.0, %v2005
      %v2007 = vpop.f32.mrf.mxu0
      %2008 = vmatprep.mubr.f32.mxu0 0.0
      %2009 = vmatmul.mubr.f32.gmra.mxu0 %v1913
      %v2010 = vpop.f32.mrf.mxu0
      %v2011 = vadd.f32 0.0, %v2010
      %v2012 = vpop.f32.mrf.mxu0
      %2013 = vmatprep.mubr.f32.mxu0 0.0
      %2014 = vmatmul.mubr.f32.gmra.mxu0 %v1916
      %v2015 = vpop.f32.mrf.mxu0
      %v2016 = vadd.f32 0.0, %v2015
      %v2017 = vpop.f32.mrf.mxu0
      %2018 = vmatprep.mubr.f32.mxu0 0.0
      %2019 = vmatmul.mubr.f32.gmra.mxu0 %v1919
      %v2020 = vpop.f32.mrf.mxu0
      %v2021 = vadd.f32 0.0, %v2020
      %v2022 = vpop.f32.mrf.mxu0
      %2023 = vmatprep.mubr.f32.mxu0 0.0
      %2024 = vmatmul.mubr.f32.gmra.mxu0 %v1922
      %v2025 = vpop.f32.mrf.mxu0
      %v2026 = vadd.f32 0.0, %v2025
      %v2027 = vpop.f32.mrf.mxu0
      %2028 = vmatprep.mubr.f32.mxu0 0.0
      %2029 = vmatmul.mubr.f32.gmra.mxu0 %v1925
      %v2030 = vpop.f32.mrf.mxu0
      %v2031 = vadd.f32 0.0, %v2030
      %v2032 = vpop.f32.mrf.mxu0
      %2033 = vmatprep.mubr.f32.mxu0 0.0
      %2034 = vmatmul.mubr.f32.gmra.mxu0 %v1928
      %v2035 = vpop.f32.mrf.mxu0
      %v2036 = vadd.f32 0.0, %v2035
      %v2037 = vpop.f32.mrf.mxu0
      %2038 = vmatprep.mubr.f32.mxu0 0.0
      %2039 = vmatmul.mubr.f32.gmra.mxu0 %v1931
      %v2040 = vpop.f32.mrf.mxu0
      %v2041 = vadd.f32 0.0, %v2040
      %v2042 = vpop.f32.mrf.mxu0
      %2043 = vmatprep.mubr.f32.mxu0 0.0
      %2044 = vmatmul.mubr.f32.gmra.mxu0 %v1934
      %v2045 = vpop.f32.mrf.mxu0
      %v2046 = vadd.f32 0.0, %v2045
      %v2047 = vpop.f32.mrf.mxu0
      %2048 = vmatprep.mubr.f32.mxu0 0.0
      %2049 = vmatmul.mubr.f32.gmra.mxu0 %v1937
      %v2050 = vpop.f32.mrf.mxu0
      %v2051 = vadd.f32 0.0, %v2050
      %v2052 = vpop.f32.mrf.mxu0
      %2053 = vdwg.mxu0
      %v2054 = vadd.f32 %v1887, %v2006
      %v2055 = vadd.f32 %v1888, %v2011
      %v2056 = vadd.f32 %v1889, %v2016
      %v2057 = vadd.f32 %v1890, %v2021
      %v2058 = vadd.f32 %v1891, %v2026
      %v2059 = vadd.f32 %v1892, %v2031
      %v2060 = vadd.f32 %v1893, %v2036
      %v2061 = vadd.f32 %v1894, %v2041
      %v2062 = vadd.f32 %v1895, %v2046
      %v2063 = vadd.f32 %v1896, %v2051
      %v2064 = vld [vmem:[#allocation2 + $0x14] sm:$0xff]
      %v2065 = vld [vmem:[#allocation2 + $0x1c] sm:$0xff]
      %v2066 = vld [vmem:[#allocation2 + $0x24] sm:$0xff]
      %v2067 = vld [vmem:[#allocation2 + $0x2c] sm:$0xff]
      %v2068 = vld [vmem:[#allocation2 + $0x34] sm:$0xff]
      %v2069 = vld [vmem:[#allocation2 + $0x3c] sm:$0xff]
      %v2070 = vld [vmem:[#allocation2 + $0x44] sm:$0xff]
      %v2071 = vld [vmem:[#allocation2 + $0x4c] sm:$0xff]
      %v2072 = vld [vmem:[#allocation2 + $0x54] sm:$0xff]
      %v2073 = vld [vmem:[#allocation2 + $0x5c] sm:$0xff]
      %s2074 = scalar_lea.vmem %s4, 48
      %v2075 = vld [vmem:[%s2074] sm:$0xff]
      %v2077 = vsel %vm1058, %v2064, 0
      %v2080 = vsel %vm1058, %v2065, 0
      %v2083 = vsel %vm1058, %v2066, 0
      %v2086 = vsel %vm1058, %v2067, 0
      %v2089 = vsel %vm1058, %v2068, 0
      %v2092 = vsel %vm1058, %v2069, 0
      %v2095 = vsel %vm1058, %v2070, 0
      %v2098 = vsel %vm1058, %v2071, 0
      %v2101 = vsel %vm1058, %v2072, 0
      %v2104 = vsel %vm1058, %v2073, 0
      %2106 = vmatprep.subr.mxu0 0.0
      %2107 = vmatpush1.msra.mxu0 0.0
      %2108 = vmatprep.subr.mxu0 0.0
      %2109 = vmatpush1.msra.mxu0 0.0
      %2110 = vmatprep.subr.mxu0 0.0
      %2111 = vmatpush1.msra.mxu0 0.0
      %2112 = vmatprep.subr.mxu0 0.0
      %2113 = vmatpush1.msra.mxu0 0.0
      %2114 = vmatprep.subr.mxu0 0.0
      %2115 = vmatpush1.msra.mxu0 0.0
      %2116 = vmatprep.subr.mxu0 0.0
      %2117 = vmatpush1.msra.mxu0 0.0
      %2118 = vmatprep.subr.mxu0 0.0
      %2119 = vmatpush1.msra.mxu0 0.0
      %2120 = vmatprep.subr.mxu0 0.0
      %2121 = vmatpush1.msra.mxu0 0.0
      %2122 = vmatprep.subr.mxu0 0.0
      %2123 = vmatpush1.msra.mxu0 0.0
      %2124 = vmatprep.subr.mxu0 0.0
      %2125 = vmatpush1.msra.mxu0 0.0
      %2126 = vmatprep.subr.mxu0 0.0
      %2127 = vmatpush1.msra.mxu0 0.0
      %2128 = vmatprep.subr.mxu0 0.0
      %2129 = vmatpush1.msra.mxu0 0.0
      %2130 = vmatprep.subr.mxu0 0.0
      %2131 = vmatpush1.msra.mxu0 0.0
      %2132 = vmatprep.subr.mxu0 0.0
      %2133 = vmatpush1.msra.mxu0 0.0
      %2134 = vmatprep.subr.mxu0 0.0
      %2135 = vmatpush1.msra.mxu0 0.0
      %2136 = vmatprep.subr.mxu0 0.0
      %2137 = vmatpush1.msra.mxu0 %v2075
      %2138 = vmatprep.subr.mxu0 0.0
      %2139 = vmatpush2.msra.mxu0 0.0
      %2140 = vmatprep.subr.mxu0 0.0
      %2141 = vmatpush2.msra.mxu0 0.0
      %2142 = vmatprep.subr.mxu0 0.0
      %2143 = vmatpush2.msra.mxu0 0.0
      %2144 = vmatprep.subr.mxu0 0.0
      %2145 = vmatpush2.msra.mxu0 0.0
      %2146 = vmatprep.subr.mxu0 0.0
      %2147 = vmatpush2.msra.mxu0 0.0
      %2148 = vmatprep.subr.mxu0 0.0
      %2149 = vmatpush2.msra.mxu0 0.0
      %2150 = vmatprep.subr.mxu0 0.0
      %2151 = vmatpush2.msra.mxu0 0.0
      %2152 = vmatprep.subr.mxu0 0.0
      %2153 = vmatpush2.msra.mxu0 0.0
      %2154 = vmatprep.subr.mxu0 0.0
      %2155 = vmatpush2.msra.mxu0 0.0
      %2156 = vmatprep.subr.mxu0 0.0
      %2157 = vmatpush2.msra.mxu0 0.0
      %2158 = vmatprep.subr.mxu0 0.0
      %2159 = vmatpush2.msra.mxu0 0.0
      %2160 = vmatprep.subr.mxu0 0.0
      %2161 = vmatpush2.msra.mxu0 0.0
      %2162 = vmatprep.subr.mxu0 0.0
      %2163 = vmatpush2.msra.mxu0 0.0
      %2164 = vmatprep.subr.mxu0 0.0
      %2165 = vmatpush2.msra.mxu0 0.0
      %2166 = vmatprep.subr.mxu0 0.0
      %2167 = vmatpush2.msra.mxu0 0.0
      %2168 = vmatprep.subr.mxu0 0.0
      %2169 = vmatpush2.msra.mxu0 0.0
      %2170 = vmatprep.mubr.f32.mxu0 0.0
      %2171 = vmatmul.mubr.f32.gmra.mxu0 %v2077
      %v2172 = vpop.f32.mrf.mxu0
      %v2173 = vadd.f32 0.0, %v2172
      %v2174 = vpop.f32.mrf.mxu0
      %2175 = vmatprep.mubr.f32.mxu0 0.0
      %2176 = vmatmul.mubr.f32.gmra.mxu0 %v2080
      %v2177 = vpop.f32.mrf.mxu0
      %v2178 = vadd.f32 0.0, %v2177
      %v2179 = vpop.f32.mrf.mxu0
      %2180 = vmatprep.mubr.f32.mxu0 0.0
      %2181 = vmatmul.mubr.f32.gmra.mxu0 %v2083
      %v2182 = vpop.f32.mrf.mxu0
      %v2183 = vadd.f32 0.0, %v2182
      %v2184 = vpop.f32.mrf.mxu0
      %2185 = vmatprep.mubr.f32.mxu0 0.0
      %2186 = vmatmul.mubr.f32.gmra.mxu0 %v2086
      %v2187 = vpop.f32.mrf.mxu0
      %v2188 = vadd.f32 0.0, %v2187
      %v2189 = vpop.f32.mrf.mxu0
      %2190 = vmatprep.mubr.f32.mxu0 0.0
      %2191 = vmatmul.mubr.f32.gmra.mxu0 %v2089
      %v2192 = vpop.f32.mrf.mxu0
      %v2193 = vadd.f32 0.0, %v2192
      %v2194 = vpop.f32.mrf.mxu0
      %2195 = vmatprep.mubr.f32.mxu0 0.0
      %2196 = vmatmul.mubr.f32.gmra.mxu0 %v2092
      %v2197 = vpop.f32.mrf.mxu0
      %v2198 = vadd.f32 0.0, %v2197
      %v2199 = vpop.f32.mrf.mxu0
      %2200 = vmatprep.mubr.f32.mxu0 0.0
      %2201 = vmatmul.mubr.f32.gmra.mxu0 %v2095
      %v2202 = vpop.f32.mrf.mxu0
      %v2203 = vadd.f32 0.0, %v2202
      %v2204 = vpop.f32.mrf.mxu0
      %2205 = vmatprep.mubr.f32.mxu0 0.0
      %2206 = vmatmul.mubr.f32.gmra.mxu0 %v2098
      %v2207 = vpop.f32.mrf.mxu0
      %v2208 = vadd.f32 0.0, %v2207
      %v2209 = vpop.f32.mrf.mxu0
      %2210 = vmatprep.mubr.f32.mxu0 0.0
      %2211 = vmatmul.mubr.f32.gmra.mxu0 %v2101
      %v2212 = vpop.f32.mrf.mxu0
      %v2213 = vadd.f32 0.0, %v2212
      %v2214 = vpop.f32.mrf.mxu0
      %2215 = vmatprep.mubr.f32.mxu0 0.0
      %2216 = vmatmul.mubr.f32.gmra.mxu0 %v2104
      %v2217 = vpop.f32.mrf.mxu0
      %v2218 = vadd.f32 0.0, %v2217
      %v2219 = vpop.f32.mrf.mxu0
      %2220 = vdwg.mxu0
      %v2221 = vadd.f32 %v2054, %v2173
      %v2222 = vadd.f32 %v2055, %v2178
      %v2223 = vadd.f32 %v2056, %v2183
      %v2224 = vadd.f32 %v2057, %v2188
      %v2225 = vadd.f32 %v2058, %v2193
      %v2226 = vadd.f32 %v2059, %v2198
      %v2227 = vadd.f32 %v2060, %v2203
      %v2228 = vadd.f32 %v2061, %v2208
      %v2229 = vadd.f32 %v2062, %v2213
      %v2230 = vadd.f32 %v2063, %v2218
      %v2231 = vld [vmem:[#allocation2 + $0x15] sm:$0xff]
      %v2232 = vld [vmem:[#allocation2 + $0x1d] sm:$0xff]
      %v2233 = vld [vmem:[#allocation2 + $0x25] sm:$0xff]
      %v2234 = vld [vmem:[#allocation2 + $0x2d] sm:$0xff]
      %v2235 = vld [vmem:[#allocation2 + $0x35] sm:$0xff]
      %v2236 = vld [vmem:[#allocation2 + $0x3d] sm:$0xff]
      %v2237 = vld [vmem:[#allocation2 + $0x45] sm:$0xff]
      %v2238 = vld [vmem:[#allocation2 + $0x4d] sm:$0xff]
      %v2239 = vld [vmem:[#allocation2 + $0x55] sm:$0xff]
      %v2240 = vld [vmem:[#allocation2 + $0x5d] sm:$0xff]
      %s2241 = scalar_lea.vmem %s4, 56
      %v2242 = vld [vmem:[%s2241] sm:$0xff]
      %v2244 = vsel %vm1058, %v2231, 0
      %v2247 = vsel %vm1058, %v2232, 0
      %v2250 = vsel %vm1058, %v2233, 0
      %v2253 = vsel %vm1058, %v2234, 0
      %v2256 = vsel %vm1058, %v2235, 0
      %v2259 = vsel %vm1058, %v2236, 0
      %v2262 = vsel %vm1058, %v2237, 0
      %v2265 = vsel %vm1058, %v2238, 0
      %v2268 = vsel %vm1058, %v2239, 0
      %v2271 = vsel %vm1058, %v2240, 0
      %2273 = vmatprep.subr.mxu0 0.0
      %2274 = vmatpush1.msra.mxu0 0.0
      %2275 = vmatprep.subr.mxu0 0.0
      %2276 = vmatpush1.msra.mxu0 0.0
      %2277 = vmatprep.subr.mxu0 0.0
      %2278 = vmatpush1.msra.mxu0 0.0
      %2279 = vmatprep.subr.mxu0 0.0
      %2280 = vmatpush1.msra.mxu0 0.0
      %2281 = vmatprep.subr.mxu0 0.0
      %2282 = vmatpush1.msra.mxu0 0.0
      %2283 = vmatprep.subr.mxu0 0.0
      %2284 = vmatpush1.msra.mxu0 0.0
      %2285 = vmatprep.subr.mxu0 0.0
      %2286 = vmatpush1.msra.mxu0 0.0
      %2287 = vmatprep.subr.mxu0 0.0
      %2288 = vmatpush1.msra.mxu0 0.0
      %2289 = vmatprep.subr.mxu0 0.0
      %2290 = vmatpush1.msra.mxu0 0.0
      %2291 = vmatprep.subr.mxu0 0.0
      %2292 = vmatpush1.msra.mxu0 0.0
      %2293 = vmatprep.subr.mxu0 0.0
      %2294 = vmatpush1.msra.mxu0 0.0
      %2295 = vmatprep.subr.mxu0 0.0
      %2296 = vmatpush1.msra.mxu0 0.0
      %2297 = vmatprep.subr.mxu0 0.0
      %2298 = vmatpush1.msra.mxu0 0.0
      %2299 = vmatprep.subr.mxu0 0.0
      %2300 = vmatpush1.msra.mxu0 0.0
      %2301 = vmatprep.subr.mxu0 0.0
      %2302 = vmatpush1.msra.mxu0 0.0
      %2303 = vmatprep.subr.mxu0 0.0
      %2304 = vmatpush1.msra.mxu0 %v2242
      %2305 = vmatprep.subr.mxu0 0.0
      %2306 = vmatpush2.msra.mxu0 0.0
      %2307 = vmatprep.subr.mxu0 0.0
      %2308 = vmatpush2.msra.mxu0 0.0
      %2309 = vmatprep.subr.mxu0 0.0
      %2310 = vmatpush2.msra.mxu0 0.0
      %2311 = vmatprep.subr.mxu0 0.0
      %2312 = vmatpush2.msra.mxu0 0.0
      %2313 = vmatprep.subr.mxu0 0.0
      %2314 = vmatpush2.msra.mxu0 0.0
      %2315 = vmatprep.subr.mxu0 0.0
      %2316 = vmatpush2.msra.mxu0 0.0
      %2317 = vmatprep.subr.mxu0 0.0
      %2318 = vmatpush2.msra.mxu0 0.0
      %2319 = vmatprep.subr.mxu0 0.0
      %2320 = vmatpush2.msra.mxu0 0.0
      %2321 = vmatprep.subr.mxu0 0.0
      %2322 = vmatpush2.msra.mxu0 0.0
      %2323 = vmatprep.subr.mxu0 0.0
      %2324 = vmatpush2.msra.mxu0 0.0
      %2325 = vmatprep.subr.mxu0 0.0
      %2326 = vmatpush2.msra.mxu0 0.0
      %2327 = vmatprep.subr.mxu0 0.0
      %2328 = vmatpush2.msra.mxu0 0.0
      %2329 = vmatprep.subr.mxu0 0.0
      %2330 = vmatpush2.msra.mxu0 0.0
      %2331 = vmatprep.subr.mxu0 0.0
      %2332 = vmatpush2.msra.mxu0 0.0
      %2333 = vmatprep.subr.mxu0 0.0
      %2334 = vmatpush2.msra.mxu0 0.0
      %2335 = vmatprep.subr.mxu0 0.0
      %2336 = vmatpush2.msra.mxu0 0.0
      %2337 = vmatprep.mubr.f32.mxu0 0.0
      %2338 = vmatmul.mubr.f32.gmra.mxu0 %v2244
      %v2339 = vpop.f32.mrf.mxu0
      %v2340 = vadd.f32 0.0, %v2339
      %v2341 = vpop.f32.mrf.mxu0
      %2342 = vmatprep.mubr.f32.mxu0 0.0
      %2343 = vmatmul.mubr.f32.gmra.mxu0 %v2247
      %v2344 = vpop.f32.mrf.mxu0
      %v2345 = vadd.f32 0.0, %v2344
      %v2346 = vpop.f32.mrf.mxu0
      %2347 = vmatprep.mubr.f32.mxu0 0.0
      %2348 = vmatmul.mubr.f32.gmra.mxu0 %v2250
      %v2349 = vpop.f32.mrf.mxu0
      %v2350 = vadd.f32 0.0, %v2349
      %v2351 = vpop.f32.mrf.mxu0
      %2352 = vmatprep.mubr.f32.mxu0 0.0
      %2353 = vmatmul.mubr.f32.gmra.mxu0 %v2253
      %v2354 = vpop.f32.mrf.mxu0
      %v2355 = vadd.f32 0.0, %v2354
      %v2356 = vpop.f32.mrf.mxu0
      %2357 = vmatprep.mubr.f32.mxu0 0.0
      %2358 = vmatmul.mubr.f32.gmra.mxu0 %v2256
      %v2359 = vpop.f32.mrf.mxu0
      %v2360 = vadd.f32 0.0, %v2359
      %v2361 = vpop.f32.mrf.mxu0
      %2362 = vmatprep.mubr.f32.mxu0 0.0
      %2363 = vmatmul.mubr.f32.gmra.mxu0 %v2259
      %v2364 = vpop.f32.mrf.mxu0
      %v2365 = vadd.f32 0.0, %v2364
      %v2366 = vpop.f32.mrf.mxu0
      %2367 = vmatprep.mubr.f32.mxu0 0.0
      %2368 = vmatmul.mubr.f32.gmra.mxu0 %v2262
      %v2369 = vpop.f32.mrf.mxu0
      %v2370 = vadd.f32 0.0, %v2369
      %v2371 = vpop.f32.mrf.mxu0
      %2372 = vmatprep.mubr.f32.mxu0 0.0
      %2373 = vmatmul.mubr.f32.gmra.mxu0 %v2265
      %v2374 = vpop.f32.mrf.mxu0
      %v2375 = vadd.f32 0.0, %v2374
      %v2376 = vpop.f32.mrf.mxu0
      %2377 = vmatprep.mubr.f32.mxu0 0.0
      %2378 = vmatmul.mubr.f32.gmra.mxu0 %v2268
      %v2379 = vpop.f32.mrf.mxu0
      %v2380 = vadd.f32 0.0, %v2379
      %v2381 = vpop.f32.mrf.mxu0
      %2382 = vmatprep.mubr.f32.mxu0 0.0
      %2383 = vmatmul.mubr.f32.gmra.mxu0 %v2271
      %v2384 = vpop.f32.mrf.mxu0
      %v2385 = vadd.f32 0.0, %v2384
      %v2386 = vpop.f32.mrf.mxu0
      %2387 = vdwg.mxu0
      %v2388 = vadd.f32 %v2221, %v2340
      %v2389 = vadd.f32 %v2222, %v2345
      %v2390 = vadd.f32 %v2223, %v2350
      %v2391 = vadd.f32 %v2224, %v2355
      %v2392 = vadd.f32 %v2225, %v2360
      %v2393 = vadd.f32 %v2226, %v2365
      %v2394 = vadd.f32 %v2227, %v2370
      %v2395 = vadd.f32 %v2228, %v2375
      %v2396 = vadd.f32 %v2229, %v2380
      %v2397 = vadd.f32 %v2230, %v2385
      %v2398 = vld [vmem:[#allocation2 + $0x16] sm:$0xff]
      %v2399 = vld [vmem:[#allocation2 + $0x1e] sm:$0xff]
      %v2400 = vld [vmem:[#allocation2 + $0x26] sm:$0xff]
      %v2401 = vld [vmem:[#allocation2 + $0x2e] sm:$0xff]
      %v2402 = vld [vmem:[#allocation2 + $0x36] sm:$0xff]
      %v2403 = vld [vmem:[#allocation2 + $0x3e] sm:$0xff]
      %v2404 = vld [vmem:[#allocation2 + $0x46] sm:$0xff]
      %v2405 = vld [vmem:[#allocation2 + $0x4e] sm:$0xff]
      %v2406 = vld [vmem:[#allocation2 + $0x56] sm:$0xff]
      %v2407 = vld [vmem:[#allocation2 + $0x5e] sm:$0xff]
      %s2408 = scalar_lea.vmem %s4, 64
      %v2409 = vld [vmem:[%s2408] sm:$0xff]
      %v2411 = vsel %vm1058, %v2398, 0
      %v2414 = vsel %vm1058, %v2399, 0
      %v2417 = vsel %vm1058, %v2400, 0
      %v2420 = vsel %vm1058, %v2401, 0
      %v2423 = vsel %vm1058, %v2402, 0
      %v2426 = vsel %vm1058, %v2403, 0
      %v2429 = vsel %vm1058, %v2404, 0
      %v2432 = vsel %vm1058, %v2405, 0
      %v2435 = vsel %vm1058, %v2406, 0
      %v2438 = vsel %vm1058, %v2407, 0
      %2440 = vmatprep.subr.mxu0 0.0
      %2441 = vmatpush1.msra.mxu0 0.0
      %2442 = vmatprep.subr.mxu0 0.0
      %2443 = vmatpush1.msra.mxu0 0.0
      %2444 = vmatprep.subr.mxu0 0.0
      %2445 = vmatpush1.msra.mxu0 0.0
      %2446 = vmatprep.subr.mxu0 0.0
      %2447 = vmatpush1.msra.mxu0 0.0
      %2448 = vmatprep.subr.mxu0 0.0
      %2449 = vmatpush1.msra.mxu0 0.0
      %2450 = vmatprep.subr.mxu0 0.0
      %2451 = vmatpush1.msra.mxu0 0.0
      %2452 = vmatprep.subr.mxu0 0.0
      %2453 = vmatpush1.msra.mxu0 0.0
      %2454 = vmatprep.subr.mxu0 0.0
      %2455 = vmatpush1.msra.mxu0 0.0
      %2456 = vmatprep.subr.mxu0 0.0
      %2457 = vmatpush1.msra.mxu0 0.0
      %2458 = vmatprep.subr.mxu0 0.0
      %2459 = vmatpush1.msra.mxu0 0.0
      %2460 = vmatprep.subr.mxu0 0.0
      %2461 = vmatpush1.msra.mxu0 0.0
      %2462 = vmatprep.subr.mxu0 0.0
      %2463 = vmatpush1.msra.mxu0 0.0
      %2464 = vmatprep.subr.mxu0 0.0
      %2465 = vmatpush1.msra.mxu0 0.0
      %2466 = vmatprep.subr.mxu0 0.0
      %2467 = vmatpush1.msra.mxu0 0.0
      %2468 = vmatprep.subr.mxu0 0.0
      %2469 = vmatpush1.msra.mxu0 0.0
      %2470 = vmatprep.subr.mxu0 0.0
      %2471 = vmatpush1.msra.mxu0 %v2409
      %2472 = vmatprep.subr.mxu0 0.0
      %2473 = vmatpush2.msra.mxu0 0.0
      %2474 = vmatprep.subr.mxu0 0.0
      %2475 = vmatpush2.msra.mxu0 0.0
      %2476 = vmatprep.subr.mxu0 0.0
      %2477 = vmatpush2.msra.mxu0 0.0
      %2478 = vmatprep.subr.mxu0 0.0
      %2479 = vmatpush2.msra.mxu0 0.0
      %2480 = vmatprep.subr.mxu0 0.0
      %2481 = vmatpush2.msra.mxu0 0.0
      %2482 = vmatprep.subr.mxu0 0.0
      %2483 = vmatpush2.msra.mxu0 0.0
      %2484 = vmatprep.subr.mxu0 0.0
      %2485 = vmatpush2.msra.mxu0 0.0
      %2486 = vmatprep.subr.mxu0 0.0
      %2487 = vmatpush2.msra.mxu0 0.0
      %2488 = vmatprep.subr.mxu0 0.0
      %2489 = vmatpush2.msra.mxu0 0.0
      %2490 = vmatprep.subr.mxu0 0.0
      %2491 = vmatpush2.msra.mxu0 0.0
      %2492 = vmatprep.subr.mxu0 0.0
      %2493 = vmatpush2.msra.mxu0 0.0
      %2494 = vmatprep.subr.mxu0 0.0
      %2495 = vmatpush2.msra.mxu0 0.0
      %2496 = vmatprep.subr.mxu0 0.0
      %2497 = vmatpush2.msra.mxu0 0.0
      %2498 = vmatprep.subr.mxu0 0.0
      %2499 = vmatpush2.msra.mxu0 0.0
      %2500 = vmatprep.subr.mxu0 0.0
      %2501 = vmatpush2.msra.mxu0 0.0
      %2502 = vmatprep.subr.mxu0 0.0
      %2503 = vmatpush2.msra.mxu0 0.0
      %2504 = vmatprep.mubr.f32.mxu0 0.0
      %2505 = vmatmul.mubr.f32.gmra.mxu0 %v2411
      %v2506 = vpop.f32.mrf.mxu0
      %v2507 = vadd.f32 0.0, %v2506
      %v2508 = vpop.f32.mrf.mxu0
      %2509 = vmatprep.mubr.f32.mxu0 0.0
      %2510 = vmatmul.mubr.f32.gmra.mxu0 %v2414
      %v2511 = vpop.f32.mrf.mxu0
      %v2512 = vadd.f32 0.0, %v2511
      %v2513 = vpop.f32.mrf.mxu0
      %2514 = vmatprep.mubr.f32.mxu0 0.0
      %2515 = vmatmul.mubr.f32.gmra.mxu0 %v2417
      %v2516 = vpop.f32.mrf.mxu0
      %v2517 = vadd.f32 0.0, %v2516
      %v2518 = vpop.f32.mrf.mxu0
      %2519 = vmatprep.mubr.f32.mxu0 0.0
      %2520 = vmatmul.mubr.f32.gmra.mxu0 %v2420
      %v2521 = vpop.f32.mrf.mxu0
      %v2522 = vadd.f32 0.0, %v2521
      %v2523 = vpop.f32.mrf.mxu0
      %2524 = vmatprep.mubr.f32.mxu0 0.0
      %2525 = vmatmul.mubr.f32.gmra.mxu0 %v2423
      %v2526 = vpop.f32.mrf.mxu0
      %v2527 = vadd.f32 0.0, %v2526
      %v2528 = vpop.f32.mrf.mxu0
      %2529 = vmatprep.mubr.f32.mxu0 0.0
      %2530 = vmatmul.mubr.f32.gmra.mxu0 %v2426
      %v2531 = vpop.f32.mrf.mxu0
      %v2532 = vadd.f32 0.0, %v2531
      %v2533 = vpop.f32.mrf.mxu0
      %2534 = vmatprep.mubr.f32.mxu0 0.0
      %2535 = vmatmul.mubr.f32.gmra.mxu0 %v2429
      %v2536 = vpop.f32.mrf.mxu0
      %v2537 = vadd.f32 0.0, %v2536
      %v2538 = vpop.f32.mrf.mxu0
      %2539 = vmatprep.mubr.f32.mxu0 0.0
      %2540 = vmatmul.mubr.f32.gmra.mxu0 %v2432
      %v2541 = vpop.f32.mrf.mxu0
      %v2542 = vadd.f32 0.0, %v2541
      %v2543 = vpop.f32.mrf.mxu0
      %2544 = vmatprep.mubr.f32.mxu0 0.0
      %2545 = vmatmul.mubr.f32.gmra.mxu0 %v2435
      %v2546 = vpop.f32.mrf.mxu0
      %v2547 = vadd.f32 0.0, %v2546
      %v2548 = vpop.f32.mrf.mxu0
      %2549 = vmatprep.mubr.f32.mxu0 0.0
      %2550 = vmatmul.mubr.f32.gmra.mxu0 %v2438
      %v2551 = vpop.f32.mrf.mxu0
      %v2552 = vadd.f32 0.0, %v2551
      %v2553 = vpop.f32.mrf.mxu0
      %2554 = vdwg.mxu0
      %v2555 = vadd.f32 %v2388, %v2507
      %v2556 = vadd.f32 %v2389, %v2512
      %v2557 = vadd.f32 %v2390, %v2517
      %v2558 = vadd.f32 %v2391, %v2522
      %v2559 = vadd.f32 %v2392, %v2527
      %v2560 = vadd.f32 %v2393, %v2532
      %v2561 = vadd.f32 %v2394, %v2537
      %v2562 = vadd.f32 %v2395, %v2542
      %v2563 = vadd.f32 %v2396, %v2547
      %v2564 = vadd.f32 %v2397, %v2552
      %v2565 = vld [vmem:[%s5] sm:$0x1]
      %v2567 = vlaneseq
      %v2568 = vshrl.u32 %v2567, 7
      %v2569 = vsub.s32 0, %v2568
      %v2570 = vrot.slane %v2565, %v2569
      %v2572 = vadd.f32 %v2555, %v2570
      %v2573 = vadd.f32 %v2556, %v2570
      %v2574 = vadd.f32 %v2557, %v2570
      %v2575 = vadd.f32 %v2558, %v2570
      %v2576 = vadd.f32 %v2559, %v2570
      %v2577 = vadd.f32 %v2560, %v2570
      %v2578 = vadd.f32 %v2561, %v2570
      %v2579 = vadd.f32 %v2562, %v2570
      %v2580 = vadd.f32 %v2563, %v2570
      %v2581 = vadd.f32 %v2564, %v2570
      %v2582 = vld [vmem:[%s293] sm:$0xff]
      %v2583 = vld [vmem:[%s293 + $0x8] sm:$0xff]
      %v2584 = vld [vmem:[%s293 + $0x10] sm:$0xff]
      %v2585 = vld [vmem:[%s293 + $0x18] sm:$0xff]
      %v2586 = vld [vmem:[%s293 + $0x20] sm:$0xff]
      %v2587 = vld [vmem:[%s293 + $0x28] sm:$0xff]
      %v2588 = vld [vmem:[%s293 + $0x30] sm:$0xff]
      %v2589 = vld [vmem:[%s293 + $0x38] sm:$0xff]
      %v2590 = vld [vmem:[%s293 + $0x40] sm:$0xff]
      %v2591 = vld [vmem:[%s293 + $0x48] sm:$0xff]
      %v2592 = vadd.f32 %v2572, %v2582
      %v2593 = vadd.f32 %v2573, %v2583
      %v2594 = vadd.f32 %v2574, %v2584
      %v2595 = vadd.f32 %v2575, %v2585
      %v2596 = vadd.f32 %v2576, %v2586
      %v2597 = vadd.f32 %v2577, %v2587
      %v2598 = vadd.f32 %v2578, %v2588
      %v2599 = vadd.f32 %v2579, %v2589
      %v2600 = vadd.f32 %v2580, %v2590
      %v2601 = vadd.f32 %v2581, %v2591
      %v2602 = vmax.f32 %v2592, 0.0
      %v2603 = vmax.f32 %v2593, 0.0
      %v2604 = vmax.f32 %v2594, 0.0
      %v2605 = vmax.f32 %v2595, 0.0
      %v2606 = vmax.f32 %v2596, 0.0
      %v2607 = vmax.f32 %v2597, 0.0
      %v2608 = vmax.f32 %v2598, 0.0
      %v2609 = vmax.f32 %v2599, 0.0
      %v2610 = vmax.f32 %v2600, 0.0
      %v2611 = vmax.f32 %v2601, 0.0
      %2612 = vst.msk [vmem:[%s298] sm:$0xff] %vm1058, %v2602
      %2613 = vst.msk [vmem:[%s298 + $0x8] sm:$0xff] %vm1058, %v2603
      %2614 = vst.msk [vmem:[%s298 + $0x10] sm:$0xff] %vm1058, %v2604
      %2615 = vst.msk [vmem:[%s298 + $0x18] sm:$0xff] %vm1058, %v2605
      %2616 = vst.msk [vmem:[%s298 + $0x20] sm:$0xff] %vm1058, %v2606
      %2617 = vst.msk [vmem:[%s298 + $0x28] sm:$0xff] %vm1058, %v2607
      %2618 = vst.msk [vmem:[%s298 + $0x30] sm:$0xff] %vm1058, %v2608
      %2619 = vst.msk [vmem:[%s298 + $0x38] sm:$0xff] %vm1058, %v2609
      %2620 = vst.msk [vmem:[%s298 + $0x40] sm:$0xff] %vm1058, %v2610
      %2621 = vst.msk [vmem:[%s298 + $0x48] sm:$0xff] %vm1058, %v2611
      %p2622 = scmp.lt.s32.totalorder %s18, 1
      %s2623 = scalar_select %p2622, %s18, 1
      %s2624 = smul.addr %s2623, 10
      %s2625 = smul.addr %s2624, 8
      %s2626 = scalar_lea.vmem %s7, %s2625
      // Predicated region
      $region49: #{basic_block_forward.1} parent=47 // pred_check
        %p2627 = pneg %p193
      $region50: #{basic_block_forward.1} parent=47 // pred_check_branch
        %2629 = sbr.rel (%p2627) target = $region52
      $region51: #{basic_block_forward.1} parent=47 // pred_region
        _
      $region52: #{basic_block_forward.1} parent=47 // pred_fallthru
        _
    $region48: #{basic_block_forward.1} parent=5 // pred_fallthru
      _
    %p2630 = scmp.le.s32.totalorder 2, %s13
    // Predicated region
    $region53: #{basic_block_forward.1} parent=5 // pred_check
      %p2631 = pneg %p2630
    $region54: #{basic_block_forward.1} parent=5 // pred_check_branch
      %2633 = sbr.rel (%p2631) target = $region56
    $region55: #{basic_block_forward.1} parent=5 // pred_region
      %s2634 = ssub.s32 %s13, 2
      // Predicated region
      $region57: #{basic_block_forward.1} parent=55 // pred_check
        %p2635 = pneg %p199
      $region58: #{basic_block_forward.1} parent=55 // pred_check_branch
        %2637 = sbr.rel (%p2635) target = $region60
      $region59: #{basic_block_forward.1} parent=55 // pred_region
        %p2638 = scmp.lt.s32.totalorder %s19, 1
        %s2639 = scalar_select %p2638, %s19, 1
        %s2640 = smul.addr %s2639, 10
        %s2641 = smul.addr %s2640, 8
        %s2642 = scalar_lea.vmem %s7, %s2641
      $region60: #{basic_block_forward.1} parent=55 // pred_fallthru
        _
    $region56: #{basic_block_forward.1} parent=5 // pred_fallthru
      _
  $region6: #{basic_block_forward.1} parent=0 // loop_footer
    %s17 = sadd.s32 1, %s13
  $region7: #{basic_block_forward.1} parent=0 // loop_footer_branch
    %12 = sbr.rel target = $region3
  $region8: #{basic_block_forward.1} parent=0 // loop_exit
    _

</llo_original>
